<compile_context>
chip_gen: v7x
topology: tpu7x:2x2x1
jax: 0.10.0
libtpu: 0.0.40
codegen_flags: <defaults>
</compile_context>

<pallas_src>
import functools

import jax
import jax.numpy as jnp
from jax.experimental import pallas as pl
from jax.experimental.pallas import tpu as pltpu


def _ceil_to(x, m):
    return ((x + m - 1) // m) * m


# --------------------------------------------------------------------------
# Fused kernel: one row-tile (TM rows) per grid step, 5 branches per step.
#   des   : (TM, 768) bf16     tweets: (TM, 768) bf16
#   num   : (TM, 5)   f32      cat   : (TM, 3)   f32      numh: (TM, 9) f32
#   w*    : (K, A)    (bf16 for the 768-wide branches, f32 for the tiny ones)
#   b*    : (1, A)    f32
#   o*    : (TM, A)   f32      (5 separate outputs -> no post-kernel slicing)
# --------------------------------------------------------------------------
def _align_kernel_fn(slope,
                     des_ref, tw_ref, num_ref, cat_ref, numh_ref,
                     wd_ref, wt_ref, wn_ref, wc_ref, wh_ref,
                     bd_ref, bt_ref, bn_ref, bc_ref, bh_ref,
                     od_ref, ot_ref, on_ref, oc_ref, oh_ref):
    def branch(x, w_ref, b_ref, o_ref):
        # MXU matmul (bf16 or f32 inputs), f32 accumulation, then bias +
        # LeakyReLU on the VPU.  Compute is fully hidden under the DMAs.
        y = jnp.dot(x, w_ref[...], preferred_element_type=jnp.float32)
        y = y + b_ref[...]
        o_ref[...] = jnp.where(y >= 0.0, y, slope * y)

    branch(des_ref[...], wd_ref, bd_ref, od_ref)
    branch(tw_ref[...], wt_ref, bt_ref, ot_ref)
    branch(num_ref[...], wn_ref, bn_ref, on_ref)
    branch(cat_ref[...], wc_ref, bc_ref, oc_ref)
    branch(numh_ref[...], wh_ref, bh_ref, oh_ref)


def feature_align_forward(params, des, tweets, num_prop, cat_prop, num_for_h,
                          *, align_size=32, slope=0.01, tile_m=1024):
    n = des.shape[0]
    A = align_size

    # Call contract: des / tweets should already be bf16 in HBM (this is where
    # the ~1.8x read-traffic win comes from).  Cast only as a fallback.
    if des.dtype != jnp.bfloat16:
        des = des.astype(jnp.bfloat16)
    if tweets.dtype != jnp.bfloat16:
        tweets = tweets.astype(jnp.bfloat16)
    num_prop = num_prop.astype(jnp.float32)
    cat_prop = cat_prop.astype(jnp.float32)
    num_for_h = num_for_h.astype(jnp.float32)

    wd = params['w_des'].astype(jnp.bfloat16)        # (768, A)
    wt = params['w_tweet'].astype(jnp.bfloat16)      # (768, A)
    wn = params['w_num'].astype(jnp.float32)         # (5, A)
    wc = params['w_cat'].astype(jnp.float32)         # (3, A)
    wh = params['w_numh'].astype(jnp.float32)        # (9, A)
    bd = params['b_des'].reshape(1, A).astype(jnp.float32)
    bt = params['b_tweet'].reshape(1, A).astype(jnp.float32)
    bn = params['b_num'].reshape(1, A).astype(jnp.float32)
    bc = params['b_cat'].reshape(1, A).astype(jnp.float32)
    bh = params['b_numh'].reshape(1, A).astype(jnp.float32)

    tm = min(tile_m, _ceil_to(n, 8))
    grid = (pl.cdiv(n, tm),)

    row_spec = lambda cols: pl.BlockSpec((tm, cols), lambda i: (i, 0))
    fixed = lambda r, c: pl.BlockSpec((r, c), lambda i: (0, 0))

    out_shapes = tuple(jax.ShapeDtypeStruct((n, A), jnp.float32)
                       for _ in range(5))
    # TODO(synk): if downstream consumers accept bf16 activations, switch the
    # out_shapes / stores to bf16 to also halve write traffic.

    outs = pl.pallas_call(
        functools.partial(_align_kernel_fn, float(slope)),
        out_shape=out_shapes,
        grid=grid,
        in_specs=[
            row_spec(768),              # des      (bf16)
            row_spec(768),              # tweets   (bf16)
            row_spec(5),                # num_prop
            row_spec(3),                # cat_prop
            row_spec(9),                # num_for_h
            fixed(768, A),              # w_des    (bf16)
            fixed(768, A),              # w_tweet  (bf16)
            fixed(5, A),                # w_num
            fixed(3, A),                # w_cat
            fixed(9, A),                # w_numh
            fixed(1, A),                # b_des
            fixed(1, A),                # b_tweet
            fixed(1, A),                # b_num
            fixed(1, A),                # b_cat
            fixed(1, A),                # b_numh
        ],
        out_specs=[row_spec(A) for _ in range(5)],
        compiler_params=pltpu.CompilerParams(
            dimension_semantics=("parallel",),           # megacore split on N
            vmem_limit_bytes=48 * 1024 * 1024),          # safe on v5e/v6e/v7x
    )(des, tweets, num_prop, cat_prop, num_for_h,
      wd, wt, wn, wc, wh, bd, bt, bn, bc, bh)

    return outs  # (des_a, tweet_a, num_a, cat_a, numh_a), each (N, A) f32


# --------------------------------------------------------------------------
# Parameters (PyTorch nn.Linear default init: U(-1/sqrt(fan_in), 1/sqrt(fan_in)))
# --------------------------------------------------------------------------
def init_params(key, align_size=32):
    def linear_init(k, fan_in, fan_out):
        k1, k2 = jax.random.split(k)
        bound = 1.0 / (fan_in ** 0.5)
        w = jax.random.uniform(k1, (fan_in, fan_out), jnp.float32, -bound, bound)
        b = jax.random.uniform(k2, (fan_out,), jnp.float32, -bound, bound)
        return w, b

    ks = jax.random.split(key, 5)
    p = {}
    p['w_des'], p['b_des'] = linear_init(ks[0], 768, align_size)
    p['w_tweet'], p['b_tweet'] = linear_init(ks[1], 768, align_size)
    p['w_num'], p['b_num'] = linear_init(ks[2], 5, align_size)
    p['w_cat'], p['b_cat'] = linear_init(ks[3], 3, align_size)
    p['w_numh'], p['b_numh'] = linear_init(ks[4], 9, align_size)
    return p


# --------------------------------------------------------------------------
if __name__ == "__main__":
    key = jax.random.PRNGKey(0)
    N, align_size = 16, 32
    k = jax.random.split(key, 5)
    # Producer contract: the 768-wide activations live in HBM as bf16.
    des = jax.random.normal(k[0], (N, 768), jnp.float32).astype(jnp.bfloat16)
    tweets = jax.random.normal(k[1], (N, 768), jnp.float32).astype(jnp.bfloat16)
    num_prop = jax.random.normal(k[2], (N, 5), jnp.float32)
    cat_prop = jax.random.normal(k[3], (N, 3), jnp.float32)
    num_for_h = jax.random.normal(k[4], (N, 9), jnp.float32)

    params = init_params(jax.random.PRNGKey(42), align_size)
    outs = feature_align_forward(params, des, tweets, num_prop, cat_prop,
                                 num_for_h, align_size=align_size)
    outs = jax.block_until_ready(outs)

    # Pure-JAX reference using the same bf16-rounded inputs/weights (f32 math).
    def leaky(x):
        return jnp.where(x >= 0, x, 0.01 * x)

    refs = (
        leaky(des.astype(jnp.float32) @ params['w_des'].astype(jnp.bfloat16)
              .astype(jnp.float32) + params['b_des']),
        leaky(tweets.astype(jnp.float32) @ params['w_tweet'].astype(jnp.bfloat16)
              .astype(jnp.float32) + params['b_tweet']),
        leaky(num_prop @ params['w_num'] + params['b_num']),
        leaky(cat_prop @ params['w_cat'] + params['b_cat']),
        leaky(num_for_h @ params['w_numh'] + params['b_numh']),
    )
    for o, r in zip(outs, refs):
        assert o.shape == r.shape and o.dtype == jnp.float32
        err = float(jnp.max(jnp.abs(o - r)))
        assert err < 5e-2, err
    print("KERNEL_OK")
</pallas_src>

<mosaic_0001>
module attributes {stable_mosaic.version = 11 : i64} {
  func.func @_align_kernel_fn(%arg0: i32, %arg1: memref<16x768xbf16, #tpu.memory_space<vmem>>, %arg2: memref<16x768xbf16, #tpu.memory_space<vmem>>, %arg3: memref<16x5xf32, #tpu.memory_space<vmem>>, %arg4: memref<16x3xf32, #tpu.memory_space<vmem>>, %arg5: memref<16x9xf32, #tpu.memory_space<vmem>>, %arg6: memref<768x32xbf16, #tpu.memory_space<vmem>>, %arg7: memref<768x32xbf16, #tpu.memory_space<vmem>>, %arg8: memref<5x32xf32, #tpu.memory_space<vmem>>, %arg9: memref<3x32xf32, #tpu.memory_space<vmem>>, %arg10: memref<9x32xf32, #tpu.memory_space<vmem>>, %arg11: memref<1x32xf32, #tpu.memory_space<vmem>>, %arg12: memref<1x32xf32, #tpu.memory_space<vmem>>, %arg13: memref<1x32xf32, #tpu.memory_space<vmem>>, %arg14: memref<1x32xf32, #tpu.memory_space<vmem>>, %arg15: memref<1x32xf32, #tpu.memory_space<vmem>>, %arg16: memref<16x32xf32, #tpu.memory_space<vmem>>, %arg17: memref<16x32xf32, #tpu.memory_space<vmem>>, %arg18: memref<16x32xf32, #tpu.memory_space<vmem>>, %arg19: memref<16x32xf32, #tpu.memory_space<vmem>>, %arg20: memref<16x32xf32, #tpu.memory_space<vmem>>) attributes {dimension_semantics = [#tpu.dimension_semantics<parallel>], iteration_bounds = array<i64: 1>, scalar_prefetch = 0 : i64, scratch_operands = 0 : i64, tpu.core_type = #tpu.core_type<tc>, window_params = [{transform_indices = @transform_0, window_bounds = array<i64: 16, 768>}, {transform_indices = @transform_1, window_bounds = array<i64: 16, 768>}, {transform_indices = @transform_2, window_bounds = array<i64: 16, 5>}, {transform_indices = @transform_3, window_bounds = array<i64: 16, 3>}, {transform_indices = @transform_4, window_bounds = array<i64: 16, 9>}, {pipeline_mode = #tpu.pipeline_mode<synchronous>, transform_indices = @transform_5, window_bounds = array<i64: 768, 32>}, {pipeline_mode = #tpu.pipeline_mode<synchronous>, transform_indices = @transform_6, window_bounds = array<i64: 768, 32>}, {pipeline_mode = #tpu.pipeline_mode<synchronous>, transform_indices = @transform_7, window_bounds = array<i64: 5, 32>}, {pipeline_mode = #tpu.pipeline_mode<synchronous>, transform_indices = @transform_8, window_bounds = array<i64: 3, 32>}, {pipeline_mode = #tpu.pipeline_mode<synchronous>, transform_indices = @transform_9, window_bounds = array<i64: 9, 32>}, {pipeline_mode = #tpu.pipeline_mode<synchronous>, transform_indices = @transform_10, window_bounds = array<i64: 1, 32>}, {pipeline_mode = #tpu.pipeline_mode<synchronous>, transform_indices = @transform_11, window_bounds = array<i64: 1, 32>}, {pipeline_mode = #tpu.pipeline_mode<synchronous>, transform_indices = @transform_12, window_bounds = array<i64: 1, 32>}, {pipeline_mode = #tpu.pipeline_mode<synchronous>, transform_indices = @transform_13, window_bounds = array<i64: 1, 32>}, {pipeline_mode = #tpu.pipeline_mode<synchronous>, transform_indices = @transform_14, window_bounds = array<i64: 1, 32>}, {transform_indices = @transform_15, window_bounds = array<i64: 16, 32>}, {transform_indices = @transform_16, window_bounds = array<i64: 16, 32>}, {transform_indices = @transform_17, window_bounds = array<i64: 16, 32>}, {transform_indices = @transform_18, window_bounds = array<i64: 16, 32>}, {transform_indices = @transform_19, window_bounds = array<i64: 16, 32>}]} {
    %c0 = arith.constant 0 : index
    %c0_0 = arith.constant 0 : index
    %0 = vector.load %arg1[%c0, %c0_0] : memref<16x768xbf16, #tpu.memory_space<vmem>>, vector<16x768xbf16>
    %c0_1 = arith.constant 0 : index
    %c0_2 = arith.constant 0 : index
    %1 = vector.load %arg6[%c0_1, %c0_2] : memref<768x32xbf16, #tpu.memory_space<vmem>>, vector<768x32xbf16>
    %cst = arith.constant dense<0.000000e+00> : vector<16x32xf32>
    %2 = tpu.matmul %0, %1, %cst {dimension_numbers = #tpu.dot_dimension_numbers<[1], [0], [0], [1], [0, 0, 1, 1], [], []>} : vector<16x768xbf16>, vector<768x32xbf16>, vector<16x32xf32> -> vector<16x32xf32>
    %c0_3 = arith.constant 0 : index
    %c0_4 = arith.constant 0 : index
    %3 = vector.load %arg11[%c0_3, %c0_4] : memref<1x32xf32, #tpu.memory_space<vmem>>, vector<1x32xf32>
    %4 = vector.broadcast %3 : vector<1x32xf32> to vector<16x32xf32>
    %5 = arith.addf %2, %4 : vector<16x32xf32>
    %cst_5 = arith.constant 0.000000e+00 : f32
    %6 = vector.broadcast %cst_5 : f32 to vector<16x32xf32>
    %7 = arith.cmpf oge, %5, %6 : vector<16x32xf32>
    %cst_6 = arith.constant 0.00999999977 : f32
    %8 = vector.broadcast %cst_6 : f32 to vector<16x32xf32>
    %9 = arith.mulf %8, %5 : vector<16x32xf32>
    %10 = arith.select %7, %5, %9 : vector<16x32xi1>, vector<16x32xf32>
    %c0_7 = arith.constant 0 : index
    %c0_8 = arith.constant 0 : index
    %11 = vector.load %arg16[%c0_7, %c0_8] : memref<16x32xf32, #tpu.memory_space<vmem>>, vector<16x32xf32>
    tpu.vector_store %arg16[%c0_7, %c0_8], %10 {strides = array<i32>} : memref<16x32xf32, #tpu.memory_space<vmem>>, vector<16x32xf32>,
    %c0_9 = arith.constant 0 : index
    %c0_10 = arith.constant 0 : index
    %12 = vector.load %arg2[%c0_9, %c0_10] : memref<16x768xbf16, #tpu.memory_space<vmem>>, vector<16x768xbf16>
    %c0_11 = arith.constant 0 : index
    %c0_12 = arith.constant 0 : index
    %13 = vector.load %arg7[%c0_11, %c0_12] : memref<768x32xbf16, #tpu.memory_space<vmem>>, vector<768x32xbf16>
    %cst_13 = arith.constant dense<0.000000e+00> : vector<16x32xf32>
    %14 = tpu.matmul %12, %13, %cst_13 {dimension_numbers = #tpu.dot_dimension_numbers<[1], [0], [0], [1], [0, 0, 1, 1], [], []>} : vector<16x768xbf16>, vector<768x32xbf16>, vector<16x32xf32> -> vector<16x32xf32>
    %c0_14 = arith.constant 0 : index
    %c0_15 = arith.constant 0 : index
    %15 = vector.load %arg12[%c0_14, %c0_15] : memref<1x32xf32, #tpu.memory_space<vmem>>, vector<1x32xf32>
    %16 = vector.broadcast %15 : vector<1x32xf32> to vector<16x32xf32>
    %17 = arith.addf %14, %16 : vector<16x32xf32>
    %cst_16 = arith.constant 0.000000e+00 : f32
    %18 = vector.broadcast %cst_16 : f32 to vector<16x32xf32>
    %19 = arith.cmpf oge, %17, %18 : vector<16x32xf32>
    %cst_17 = arith.constant 0.00999999977 : f32
    %20 = vector.broadcast %cst_17 : f32 to vector<16x32xf32>
    %21 = arith.mulf %20, %17 : vector<16x32xf32>
    %22 = arith.select %19, %17, %21 : vector<16x32xi1>, vector<16x32xf32>
    %c0_18 = arith.constant 0 : index
    %c0_19 = arith.constant 0 : index
    %23 = vector.load %arg17[%c0_18, %c0_19] : memref<16x32xf32, #tpu.memory_space<vmem>>, vector<16x32xf32>
    tpu.vector_store %arg17[%c0_18, %c0_19], %22 {strides = array<i32>} : memref<16x32xf32, #tpu.memory_space<vmem>>, vector<16x32xf32>,
    %c0_20 = arith.constant 0 : index
    %c0_21 = arith.constant 0 : index
    %24 = vector.load %arg3[%c0_20, %c0_21] : memref<16x5xf32, #tpu.memory_space<vmem>>, vector<16x5xf32>
    %c0_22 = arith.constant 0 : index
    %c0_23 = arith.constant 0 : index
    %25 = vector.load %arg8[%c0_22, %c0_23] : memref<5x32xf32, #tpu.memory_space<vmem>>, vector<5x32xf32>
    %cst_24 = arith.constant dense<0.000000e+00> : vector<16x32xf32>
    %26 = tpu.matmul %24, %25, %cst_24 {dimension_numbers = #tpu.dot_dimension_numbers<[1], [0], [0], [1], [0, 0, 1, 1], [], []>} : vector<16x5xf32>, vector<5x32xf32>, vector<16x32xf32> -> vector<16x32xf32>
    %c0_25 = arith.constant 0 : index
    %c0_26 = arith.constant 0 : index
    %27 = vector.load %arg13[%c0_25, %c0_26] : memref<1x32xf32, #tpu.memory_space<vmem>>, vector<1x32xf32>
    %28 = vector.broadcast %27 : vector<1x32xf32> to vector<16x32xf32>
    %29 = arith.addf %26, %28 : vector<16x32xf32>
    %cst_27 = arith.constant 0.000000e+00 : f32
    %30 = vector.broadcast %cst_27 : f32 to vector<16x32xf32>
    %31 = arith.cmpf oge, %29, %30 : vector<16x32xf32>
    %cst_28 = arith.constant 0.00999999977 : f32
    %32 = vector.broadcast %cst_28 : f32 to vector<16x32xf32>
    %33 = arith.mulf %32, %29 : vector<16x32xf32>
    %34 = arith.select %31, %29, %33 : vector<16x32xi1>, vector<16x32xf32>
    %c0_29 = arith.constant 0 : index
    %c0_30 = arith.constant 0 : index
    %35 = vector.load %arg18[%c0_29, %c0_30] : memref<16x32xf32, #tpu.memory_space<vmem>>, vector<16x32xf32>
    tpu.vector_store %arg18[%c0_29, %c0_30], %34 {strides = array<i32>} : memref<16x32xf32, #tpu.memory_space<vmem>>, vector<16x32xf32>,
    %c0_31 = arith.constant 0 : index
    %c0_32 = arith.constant 0 : index
    %36 = vector.load %arg4[%c0_31, %c0_32] : memref<16x3xf32, #tpu.memory_space<vmem>>, vector<16x3xf32>
    %c0_33 = arith.constant 0 : index
    %c0_34 = arith.constant 0 : index
    %37 = vector.load %arg9[%c0_33, %c0_34] : memref<3x32xf32, #tpu.memory_space<vmem>>, vector<3x32xf32>
    %cst_35 = arith.constant dense<0.000000e+00> : vector<16x32xf32>
    %38 = tpu.matmul %36, %37, %cst_35 {dimension_numbers = #tpu.dot_dimension_numbers<[1], [0], [0], [1], [0, 0, 1, 1], [], []>} : vector<16x3xf32>, vector<3x32xf32>, vector<16x32xf32> -> vector<16x32xf32>
    %c0_36 = arith.constant 0 : index
    %c0_37 = arith.constant 0 : index
    %39 = vector.load %arg14[%c0_36, %c0_37] : memref<1x32xf32, #tpu.memory_space<vmem>>, vector<1x32xf32>
    %40 = vector.broadcast %39 : vector<1x32xf32> to vector<16x32xf32>
    %41 = arith.addf %38, %40 : vector<16x32xf32>
    %cst_38 = arith.constant 0.000000e+00 : f32
    %42 = vector.broadcast %cst_38 : f32 to vector<16x32xf32>
    %43 = arith.cmpf oge, %41, %42 : vector<16x32xf32>
    %cst_39 = arith.constant 0.00999999977 : f32
    %44 = vector.broadcast %cst_39 : f32 to vector<16x32xf32>
    %45 = arith.mulf %44, %41 : vector<16x32xf32>
    %46 = arith.select %43, %41, %45 : vector<16x32xi1>, vector<16x32xf32>
    %c0_40 = arith.constant 0 : index
    %c0_41 = arith.constant 0 : index
    %47 = vector.load %arg19[%c0_40, %c0_41] : memref<16x32xf32, #tpu.memory_space<vmem>>, vector<16x32xf32>
    tpu.vector_store %arg19[%c0_40, %c0_41], %46 {strides = array<i32>} : memref<16x32xf32, #tpu.memory_space<vmem>>, vector<16x32xf32>,
    %c0_42 = arith.constant 0 : index
    %c0_43 = arith.constant 0 : index
    %48 = vector.load %arg5[%c0_42, %c0_43] : memref<16x9xf32, #tpu.memory_space<vmem>>, vector<16x9xf32>
    %c0_44 = arith.constant 0 : index
    %c0_45 = arith.constant 0 : index
    %49 = vector.load %arg10[%c0_44, %c0_45] : memref<9x32xf32, #tpu.memory_space<vmem>>, vector<9x32xf32>
    %cst_46 = arith.constant dense<0.000000e+00> : vector<16x32xf32>
    %50 = tpu.matmul %48, %49, %cst_46 {dimension_numbers = #tpu.dot_dimension_numbers<[1], [0], [0], [1], [0, 0, 1, 1], [], []>} : vector<16x9xf32>, vector<9x32xf32>, vector<16x32xf32> -> vector<16x32xf32>
    %c0_47 = arith.constant 0 : index
    %c0_48 = arith.constant 0 : index
    %51 = vector.load %arg15[%c0_47, %c0_48] : memref<1x32xf32, #tpu.memory_space<vmem>>, vector<1x32xf32>
    %52 = vector.broadcast %51 : vector<1x32xf32> to vector<16x32xf32>
    %53 = arith.addf %50, %52 : vector<16x32xf32>
    %cst_49 = arith.constant 0.000000e+00 : f32
    %54 = vector.broadcast %cst_49 : f32 to vector<16x32xf32>
    %55 = arith.cmpf oge, %53, %54 : vector<16x32xf32>
    %cst_50 = arith.constant 0.00999999977 : f32
    %56 = vector.broadcast %cst_50 : f32 to vector<16x32xf32>
    %57 = arith.mulf %56, %53 : vector<16x32xf32>
    %58 = arith.select %55, %53, %57 : vector<16x32xi1>, vector<16x32xf32>
    %c0_51 = arith.constant 0 : index
    %c0_52 = arith.constant 0 : index
    %59 = vector.load %arg20[%c0_51, %c0_52] : memref<16x32xf32, #tpu.memory_space<vmem>>, vector<16x32xf32>
    tpu.vector_store %arg20[%c0_51, %c0_52], %58 {strides = array<i32>} : memref<16x32xf32, #tpu.memory_space<vmem>>, vector<16x32xf32>,
    return
  }
  func.func @transform_0(%arg0: i32) -> (i32, i32) {
    %c0_i32 = arith.constant 0 : i32
    %c0_i32_0 = arith.constant 0 : i32
    return %arg0, %c0_i32 : i32, i32
  }
  func.func @transform_1(%arg0: i32) -> (i32, i32) {
    %c0_i32 = arith.constant 0 : i32
    %c0_i32_0 = arith.constant 0 : i32
    return %arg0, %c0_i32 : i32, i32
  }
  func.func @transform_2(%arg0: i32) -> (i32, i32) {
    %c0_i32 = arith.constant 0 : i32
    %c0_i32_0 = arith.constant 0 : i32
    return %arg0, %c0_i32 : i32, i32
  }
  func.func @transform_3(%arg0: i32) -> (i32, i32) {
    %c0_i32 = arith.constant 0 : i32
    %c0_i32_0 = arith.constant 0 : i32
    return %arg0, %c0_i32 : i32, i32
  }
  func.func @transform_4(%arg0: i32) -> (i32, i32) {
    %c0_i32 = arith.constant 0 : i32
    %c0_i32_0 = arith.constant 0 : i32
    return %arg0, %c0_i32 : i32, i32
  }
  func.func @transform_5(%arg0: i32) -> (i32, i32) {
    %c0_i32 = arith.constant 0 : i32
    %c0_i32_0 = arith.constant 0 : i32
    %c0_i32_1 = arith.constant 0 : i32
    return %c0_i32, %c0_i32_0 : i32, i32
  }
  func.func @transform_6(%arg0: i32) -> (i32, i32) {
    %c0_i32 = arith.constant 0 : i32
    %c0_i32_0 = arith.constant 0 : i32
    %c0_i32_1 = arith.constant 0 : i32
    return %c0_i32, %c0_i32_0 : i32, i32
  }
  func.func @transform_7(%arg0: i32) -> (i32, i32) {
    %c0_i32 = arith.constant 0 : i32
    %c0_i32_0 = arith.constant 0 : i32
    %c0_i32_1 = arith.constant 0 : i32
    return %c0_i32, %c0_i32_0 : i32, i32
  }
  func.func @transform_8(%arg0: i32) -> (i32, i32) {
    %c0_i32 = arith.constant 0 : i32
    %c0_i32_0 = arith.constant 0 : i32
    %c0_i32_1 = arith.constant 0 : i32
    return %c0_i32, %c0_i32_0 : i32, i32
  }
  func.func @transform_9(%arg0: i32) -> (i32, i32) {
    %c0_i32 = arith.constant 0 : i32
    %c0_i32_0 = arith.constant 0 : i32
    %c0_i32_1 = arith.constant 0 : i32
    return %c0_i32, %c0_i32_0 : i32, i32
  }
  func.func @transform_10(%arg0: i32) -> (i32, i32) {
    %c0_i32 = arith.constant 0 : i32
    %c0_i32_0 = arith.constant 0 : i32
    %c0_i32_1 = arith.constant 0 : i32
    return %c0_i32, %c0_i32_0 : i32, i32
  }
  func.func @transform_11(%arg0: i32) -> (i32, i32) {
    %c0_i32 = arith.constant 0 : i32
    %c0_i32_0 = arith.constant 0 : i32
    %c0_i32_1 = arith.constant 0 : i32
    return %c0_i32, %c0_i32_0 : i32, i32
  }
  func.func @transform_12(%arg0: i32) -> (i32, i32) {
    %c0_i32 = arith.constant 0 : i32
    %c0_i32_0 = arith.constant 0 : i32
    %c0_i32_1 = arith.constant 0 : i32
    return %c0_i32, %c0_i32_0 : i32, i32
  }
  func.func @transform_13(%arg0: i32) -> (i32, i32) {
    %c0_i32 = arith.constant 0 : i32
    %c0_i32_0 = arith.constant 0 : i32
    %c0_i32_1 = arith.constant 0 : i32
    return %c0_i32, %c0_i32_0 : i32, i32
  }
  func.func @transform_14(%arg0: i32) -> (i32, i32) {
    %c0_i32 = arith.constant 0 : i32
    %c0_i32_0 = arith.constant 0 : i32
    %c0_i32_1 = arith.constant 0 : i32
    return %c0_i32, %c0_i32_0 : i32, i32
  }
  func.func @transform_15(%arg0: i32) -> (i32, i32) {
    %c0_i32 = arith.constant 0 : i32
    %c0_i32_0 = arith.constant 0 : i32
    return %arg0, %c0_i32 : i32, i32
  }
  func.func @transform_16(%arg0: i32) -> (i32, i32) {
    %c0_i32 = arith.constant 0 : i32
    %c0_i32_0 = arith.constant 0 : i32
    return %arg0, %c0_i32 : i32, i32
  }
  func.func @transform_17(%arg0: i32) -> (i32, i32) {
    %c0_i32 = arith.constant 0 : i32
    %c0_i32_0 = arith.constant 0 : i32
    return %arg0, %c0_i32 : i32, i32
  }
  func.func @transform_18(%arg0: i32) -> (i32, i32) {
    %c0_i32 = arith.constant 0 : i32
    %c0_i32_0 = arith.constant 0 : i32
    return %arg0, %c0_i32 : i32, i32
  }
  func.func @transform_19(%arg0: i32) -> (i32, i32) {
    %c0_i32 = arith.constant 0 : i32
    %c0_i32_0 = arith.constant 0 : i32
    return %arg0, %c0_i32 : i32, i32
  }
}

</mosaic_0001>

<llo_original>
// kernel: tpu_custom_call.1
$region0: #{tpu_custom_call.1}
  #allocation0 [shape = 'u32[]', space=smem, size = 0x4, offset = 0x4, fixed_abs, tag = 'smem constant byte address 0x4 - core index']
  #allocation1 [shape = 'u32[144,128]{1,0:T(1,128)}', space=vmem, size = 0x12000, scoped, tag = 'internal scratch']
  %s0 = inlined_call_operand.vmem [shape: bf16[16,768], index: 0, kind: input, shape index: {}]
  %s1 = inlined_call_operand.vmem [shape: bf16[16,768], index: 1, kind: input, shape index: {}]
  %s2 = inlined_call_operand.vmem [shape: f32[16,5], index: 2, kind: input, shape index: {}]
  %s3 = inlined_call_operand.vmem [shape: f32[16,3], index: 3, kind: input, shape index: {}]
  %s4 = inlined_call_operand.vmem [shape: f32[16,9], index: 4, kind: input, shape index: {}]
  %s5 = inlined_call_operand.vmem [shape: bf16[768,32], index: 5, kind: input, shape index: {}]
  %s6 = inlined_call_operand.vmem [shape: bf16[768,32], index: 6, kind: input, shape index: {}]
  %s7 = inlined_call_operand.vmem [shape: f32[5,32], index: 7, kind: input, shape index: {}]
  %s8 = inlined_call_operand.vmem [shape: f32[3,32], index: 8, kind: input, shape index: {}]
  %s9 = inlined_call_operand.vmem [shape: f32[9,32], index: 9, kind: input, shape index: {}]
  %s10 = inlined_call_operand.vmem [shape: f32[1,32], index: 10, kind: input, shape index: {}]
  %s11 = inlined_call_operand.vmem [shape: f32[1,32], index: 11, kind: input, shape index: {}]
  %s12 = inlined_call_operand.vmem [shape: f32[1,32], index: 12, kind: input, shape index: {}]
  %s13 = inlined_call_operand.vmem [shape: f32[1,32], index: 13, kind: input, shape index: {}]
  %s14 = inlined_call_operand.vmem [shape: f32[1,32], index: 14, kind: input, shape index: {}]
  %s15 = inlined_call_operand.hbm [shape: f32[16,32], index: 15, kind: output, shape index: {0}]
  %s16 = inlined_call_operand.hbm [shape: f32[16,32], index: 16, kind: output, shape index: {1}]
  %s17 = inlined_call_operand.hbm [shape: f32[16,32], index: 17, kind: output, shape index: {2}]
  %s18 = inlined_call_operand.hbm [shape: f32[16,32], index: 18, kind: output, shape index: {3}]
  %s19 = inlined_call_operand.hbm [shape: f32[16,32], index: 19, kind: output, shape index: {4}]
  %20 = xla_tuple %s15, %s16, %s17, %s18, %s19
  %s21 = sld [smem:[#allocation0]]
  $region102: #{tpu_custom_call.1} parent=0
    _
  %s23 = ssub.s32 1, %s21
  %s24 = scalar_select 0, %s23, %s21
  $region1: #{tpu_custom_call.1} parent=0
    #allocation2 [shape = 'u8[8192]{0}', space=vmem, size = 0x2000, scoped, tag = 'output window, operand 0, single buffered']
    #allocation3 [shape = 's32[1]{0}', space=sflag, size = 0x4, scoped, tag = 'scoped memory for tpu_custom_call.1']
    #allocation4 [shape = 'u8[8192]{0}', space=vmem, size = 0x2000, scoped, tag = 'output window, operand 1, single buffered']
    #allocation5 [shape = 's32[1]{0}', space=sflag, size = 0x4, scoped, tag = 'scoped memory for tpu_custom_call.1']
    #allocation6 [shape = 'u8[8192]{0}', space=vmem, size = 0x2000, scoped, tag = 'output window, operand 2, single buffered']
    #allocation7 [shape = 'u8[8192]{0}', space=vmem, size = 0x2000, scoped, tag = 'output window, operand 3, single buffered']
    #allocation8 [shape = 's32[1]{0}', space=sflag, size = 0x4, scoped, tag = 'scoped memory for tpu_custom_call.1']
    #allocation9 [shape = 'u8[8192]{0}', space=vmem, size = 0x2000, scoped, tag = 'output window, operand 4, single buffered']
    %25 = vsyncpa [#allocation3], 0
    %26 = vsyncpa [#allocation5], 0
    %27 = vsyncpa [#allocation8], 0
    // Predicated region
    $region2: #{tpu_custom_call.1} parent=1 // pred_check
      _
    $region3: #{tpu_custom_call.1} parent=1 // pred_check_branch
      %29 = sbr.rel (0) target = $region5
    $region4: #{tpu_custom_call.1} parent=1 // pred_region
      _
    $region5: #{tpu_custom_call.1} parent=1 // pred_fallthru
      _
    // Predicated region
    $region6: #{tpu_custom_call.1} parent=1 // pred_check
      _
    $region7: #{tpu_custom_call.1} parent=1 // pred_check_branch
      %31 = sbr.rel (0) target = $region9
    $region8: #{tpu_custom_call.1} parent=1 // pred_region
      _
    $region9: #{tpu_custom_call.1} parent=1 // pred_fallthru
      _
    // Predicated region
    $region10: #{tpu_custom_call.1} parent=1 // pred_check
      _
    $region11: #{tpu_custom_call.1} parent=1 // pred_check_branch
      %33 = sbr.rel (0) target = $region13
    $region12: #{tpu_custom_call.1} parent=1 // pred_region
      _
    $region13: #{tpu_custom_call.1} parent=1 // pred_fallthru
      _
    // Predicated region
    $region14: #{tpu_custom_call.1} parent=1 // pred_check
      _
    $region15: #{tpu_custom_call.1} parent=1 // pred_check_branch
      %35 = sbr.rel (0) target = $region17
    $region16: #{tpu_custom_call.1} parent=1 // pred_region
      _
    $region17: #{tpu_custom_call.1} parent=1 // pred_fallthru
      _
    // Predicated region
    $region18: #{tpu_custom_call.1} parent=1 // pred_check
      _
    $region19: #{tpu_custom_call.1} parent=1 // pred_check_branch
      %37 = sbr.rel (0) target = $region21
    $region20: #{tpu_custom_call.1} parent=1 // pred_region
      _
    $region21: #{tpu_custom_call.1} parent=1 // pred_fallthru
      _
    // Predicated region
    $region22: #{tpu_custom_call.1} parent=1 // pred_check
      _
    $region23: #{tpu_custom_call.1} parent=1 // pred_check_branch
      %39 = sbr.rel (0) target = $region25
    $region24: #{tpu_custom_call.1} parent=1 // pred_region
      _
    $region25: #{tpu_custom_call.1} parent=1 // pred_fallthru
      _
    // Predicated region
    $region26: #{tpu_custom_call.1} parent=1 // pred_check
      _
    $region27: #{tpu_custom_call.1} parent=1 // pred_check_branch
      %41 = sbr.rel (0) target = $region29
    $region28: #{tpu_custom_call.1} parent=1 // pred_region
      _
    $region29: #{tpu_custom_call.1} parent=1 // pred_fallthru
      _
    // Predicated region
    $region30: #{tpu_custom_call.1} parent=1 // pred_check
      _
    $region31: #{tpu_custom_call.1} parent=1 // pred_check_branch
      %43 = sbr.rel (0) target = $region33
    $region32: #{tpu_custom_call.1} parent=1 // pred_region
      _
    $region33: #{tpu_custom_call.1} parent=1 // pred_fallthru
      _
    // Predicated region
    $region34: #{tpu_custom_call.1} parent=1 // pred_check
      _
    $region35: #{tpu_custom_call.1} parent=1 // pred_check_branch
      %45 = sbr.rel (0) target = $region37
    $region36: #{tpu_custom_call.1} parent=1 // pred_region
      _
    $region37: #{tpu_custom_call.1} parent=1 // pred_fallthru
      _
    // Predicated region
    $region38: #{tpu_custom_call.1} parent=1 // pred_check
      _
    $region39: #{tpu_custom_call.1} parent=1 // pred_check_branch
      %47 = sbr.rel (0) target = $region41
    $region40: #{tpu_custom_call.1} parent=1 // pred_region
      _
    $region41: #{tpu_custom_call.1} parent=1 // pred_fallthru
      _
    // Predicated region
    $region42: #{tpu_custom_call.1} parent=1 // pred_check
      _
    $region43: #{tpu_custom_call.1} parent=1 // pred_check_branch
      %49 = sbr.rel (0) target = $region45
    $region44: #{tpu_custom_call.1} parent=1 // pred_region
      _
    $region45: #{tpu_custom_call.1} parent=1 // pred_fallthru
      _
    // Predicated region
    $region46: #{tpu_custom_call.1} parent=1 // pred_check
      _
    $region47: #{tpu_custom_call.1} parent=1 // pred_check_branch
      %51 = sbr.rel (0) target = $region49
    $region48: #{tpu_custom_call.1} parent=1 // pred_region
      _
    $region49: #{tpu_custom_call.1} parent=1 // pred_fallthru
      _
    // Predicated region
    $region50: #{tpu_custom_call.1} parent=1 // pred_check
      _
    $region51: #{tpu_custom_call.1} parent=1 // pred_check_branch
      %53 = sbr.rel (0) target = $region53
    $region52: #{tpu_custom_call.1} parent=1 // pred_region
      _
    $region53: #{tpu_custom_call.1} parent=1 // pred_fallthru
      _
    // Predicated region
    $region54: #{tpu_custom_call.1} parent=1 // pred_check
      _
    $region55: #{tpu_custom_call.1} parent=1 // pred_check_branch
      %55 = sbr.rel (0) target = $region57
    $region56: #{tpu_custom_call.1} parent=1 // pred_region
      _
    $region57: #{tpu_custom_call.1} parent=1 // pred_fallthru
      _
    // Predicated region
    $region58: #{tpu_custom_call.1} parent=1 // pred_check
      _
    $region59: #{tpu_custom_call.1} parent=1 // pred_check_branch
      %57 = sbr.rel (0) target = $region61
    $region60: #{tpu_custom_call.1} parent=1 // pred_region
      _
    $region61: #{tpu_custom_call.1} parent=1 // pred_fallthru
      _
    %v59 = vld [vmem:[%s0] sm:$0xff]
    %v60 = vld [vmem:[%s0 + $0x8] sm:$0xff]
    %v61 = vld [vmem:[%s0 + $0x10] sm:$0xff]
    %v62 = vld [vmem:[%s0 + $0x18] sm:$0xff]
    %v63 = vld [vmem:[%s0 + $0x20] sm:$0xff]
    %v64 = vld [vmem:[%s0 + $0x28] sm:$0xff]
    %v65 = vld [vmem:[%s5] sm:$0xf]
    %v66 = vld [vmem:[%s5 + $0x4] sm:$0xf]
    %v67 = vld [vmem:[%s5 + $0x8] sm:$0xf]
    %v68 = vld [vmem:[%s5 + $0xc] sm:$0xf]
    %v69 = vld [vmem:[%s5 + $0x10] sm:$0xf]
    %v70 = vld [vmem:[%s5 + $0x14] sm:$0xf]
    %v71 = vld [vmem:[%s5 + $0x18] sm:$0xf]
    %v72 = vld [vmem:[%s5 + $0x1c] sm:$0xf]
    %v73 = vld [vmem:[%s5 + $0x20] sm:$0xf]
    %v74 = vld [vmem:[%s5 + $0x24] sm:$0xf]
    %v75 = vld [vmem:[%s5 + $0x28] sm:$0xf]
    %v76 = vld [vmem:[%s5 + $0x2c] sm:$0xf]
    %v77 = vld [vmem:[%s5 + $0x30] sm:$0xf]
    %v78 = vld [vmem:[%s5 + $0x34] sm:$0xf]
    %v79 = vld [vmem:[%s5 + $0x38] sm:$0xf]
    %v80 = vld [vmem:[%s5 + $0x3c] sm:$0xf]
    %v81 = vld [vmem:[%s5 + $0x40] sm:$0xf]
    %v82 = vld [vmem:[%s5 + $0x44] sm:$0xf]
    %v83 = vld [vmem:[%s5 + $0x48] sm:$0xf]
    %v84 = vld [vmem:[%s5 + $0x4c] sm:$0xf]
    %v85 = vld [vmem:[%s5 + $0x50] sm:$0xf]
    %v86 = vld [vmem:[%s5 + $0x54] sm:$0xf]
    %v87 = vld [vmem:[%s5 + $0x58] sm:$0xf]
    %v88 = vld [vmem:[%s5 + $0x5c] sm:$0xf]
    %v89 = vld [vmem:[%s5 + $0x60] sm:$0xf]
    %v90 = vld [vmem:[%s5 + $0x64] sm:$0xf]
    %v91 = vld [vmem:[%s5 + $0x68] sm:$0xf]
    %v92 = vld [vmem:[%s5 + $0x6c] sm:$0xf]
    %v93 = vld [vmem:[%s5 + $0x70] sm:$0xf]
    %v94 = vld [vmem:[%s5 + $0x74] sm:$0xf]
    %v95 = vld [vmem:[%s5 + $0x78] sm:$0xf]
    %v96 = vld [vmem:[%s5 + $0x7c] sm:$0xf]
    %v97 = vld [vmem:[%s5 + $0x80] sm:$0xf]
    %v98 = vld [vmem:[%s5 + $0x84] sm:$0xf]
    %v99 = vld [vmem:[%s5 + $0x88] sm:$0xf]
    %v100 = vld [vmem:[%s5 + $0x8c] sm:$0xf]
    %v101 = vld [vmem:[%s5 + $0x90] sm:$0xf]
    %v102 = vld [vmem:[%s5 + $0x94] sm:$0xf]
    %v103 = vld [vmem:[%s5 + $0x98] sm:$0xf]
    %v104 = vld [vmem:[%s5 + $0x9c] sm:$0xf]
    %v105 = vld [vmem:[%s5 + $0xa0] sm:$0xf]
    %v106 = vld [vmem:[%s5 + $0xa4] sm:$0xf]
    %v107 = vld [vmem:[%s5 + $0xa8] sm:$0xf]
    %v108 = vld [vmem:[%s5 + $0xac] sm:$0xf]
    %v109 = vld [vmem:[%s5 + $0xb0] sm:$0xf]
    %v110 = vld [vmem:[%s5 + $0xb4] sm:$0xf]
    %v111 = vld [vmem:[%s5 + $0xb8] sm:$0xf]
    %v112 = vld [vmem:[%s5 + $0xbc] sm:$0xf]
    %v113 = vld [vmem:[%s5 + $0xc0] sm:$0xf]
    %v114 = vld [vmem:[%s5 + $0xc4] sm:$0xf]
    %v115 = vld [vmem:[%s5 + $0xc8] sm:$0xf]
    %v116 = vld [vmem:[%s5 + $0xcc] sm:$0xf]
    %v117 = vld [vmem:[%s5 + $0xd0] sm:$0xf]
    %v118 = vld [vmem:[%s5 + $0xd4] sm:$0xf]
    %v119 = vld [vmem:[%s5 + $0xd8] sm:$0xf]
    %v120 = vld [vmem:[%s5 + $0xdc] sm:$0xf]
    %v121 = vld [vmem:[%s5 + $0xe0] sm:$0xf]
    %v122 = vld [vmem:[%s5 + $0xe4] sm:$0xf]
    %v123 = vld [vmem:[%s5 + $0xe8] sm:$0xf]
    %v124 = vld [vmem:[%s5 + $0xec] sm:$0xf]
    %v125 = vld [vmem:[%s5 + $0xf0] sm:$0xf]
    %v126 = vld [vmem:[%s5 + $0xf4] sm:$0xf]
    %v127 = vld [vmem:[%s5 + $0xf8] sm:$0xf]
    %v128 = vld [vmem:[%s5 + $0xfc] sm:$0xf]
    %v129 = vld [vmem:[%s5 + $0x100] sm:$0xf]
    %v130 = vld [vmem:[%s5 + $0x104] sm:$0xf]
    %v131 = vld [vmem:[%s5 + $0x108] sm:$0xf]
    %v132 = vld [vmem:[%s5 + $0x10c] sm:$0xf]
    %v133 = vld [vmem:[%s5 + $0x110] sm:$0xf]
    %v134 = vld [vmem:[%s5 + $0x114] sm:$0xf]
    %v135 = vld [vmem:[%s5 + $0x118] sm:$0xf]
    %v136 = vld [vmem:[%s5 + $0x11c] sm:$0xf]
    %v137 = vld [vmem:[%s5 + $0x120] sm:$0xf]
    %v138 = vld [vmem:[%s5 + $0x124] sm:$0xf]
    %v139 = vld [vmem:[%s5 + $0x128] sm:$0xf]
    %v140 = vld [vmem:[%s5 + $0x12c] sm:$0xf]
    %v141 = vld [vmem:[%s5 + $0x130] sm:$0xf]
    %v142 = vld [vmem:[%s5 + $0x134] sm:$0xf]
    %v143 = vld [vmem:[%s5 + $0x138] sm:$0xf]
    %v144 = vld [vmem:[%s5 + $0x13c] sm:$0xf]
    %v145 = vld [vmem:[%s5 + $0x140] sm:$0xf]
    %v146 = vld [vmem:[%s5 + $0x144] sm:$0xf]
    %v147 = vld [vmem:[%s5 + $0x148] sm:$0xf]
    %v148 = vld [vmem:[%s5 + $0x14c] sm:$0xf]
    %v149 = vld [vmem:[%s5 + $0x150] sm:$0xf]
    %v150 = vld [vmem:[%s5 + $0x154] sm:$0xf]
    %v151 = vld [vmem:[%s5 + $0x158] sm:$0xf]
    %v152 = vld [vmem:[%s5 + $0x15c] sm:$0xf]
    %v153 = vld [vmem:[%s5 + $0x160] sm:$0xf]
    %v154 = vld [vmem:[%s5 + $0x164] sm:$0xf]
    %v155 = vld [vmem:[%s5 + $0x168] sm:$0xf]
    %v156 = vld [vmem:[%s5 + $0x16c] sm:$0xf]
    %v157 = vld [vmem:[%s5 + $0x170] sm:$0xf]
    %v158 = vld [vmem:[%s5 + $0x174] sm:$0xf]
    %v159 = vld [vmem:[%s5 + $0x178] sm:$0xf]
    %v160 = vld [vmem:[%s5 + $0x17c] sm:$0xf]
    %v161 = vld [vmem:[%s10] sm:$0x1]
    %v163 = vlaneseq
    %v164 = vshrl.u32 %v163, 7
    %v165 = vsub.s32 0, %v164
    %v166 = vrot.slane %v161, %v165
    %v174 = vunpack.c.l.b16 %v59
    %v175 = vunpack.c.h.b16 %v59
    %v176 = vunpack.c.l.b16 %v60
    %v177 = vunpack.c.h.b16 %v60
    %v178 = vunpack.c.l.b16 %v61
    %v179 = vunpack.c.h.b16 %v61
    %v180 = vunpack.c.l.b16 %v62
    %v181 = vunpack.c.h.b16 %v62
    %v182 = vunpack.c.l.b16 %v63
    %v183 = vunpack.c.h.b16 %v63
    %v184 = vunpack.c.l.b16 %v64
    %v185 = vunpack.c.h.b16 %v64
    %v186 = vpack.c.b16 %v180, %v174
    %v187 = vpack.c.b16 %v181, %v175
    %v188 = vpack.c.b16 %v182, %v176
    %v189 = vpack.c.b16 %v183, %v177
    %v190 = vpack.c.b16 %v184, %v178
    %v191 = vpack.c.b16 %v185, %v179
    %v294 = vunpack.c.l.b16 %v65
    %v295 = vunpack.c.l.b16 %v66
    %v296 = vunpack.c.l.b16 %v67
    %v297 = vunpack.c.l.b16 %v68
    %v298 = vunpack.c.l.b16 %v69
    %v299 = vunpack.c.l.b16 %v70
    %v300 = vunpack.c.l.b16 %v71
    %v301 = vunpack.c.l.b16 %v72
    %v302 = vunpack.c.l.b16 %v73
    %v303 = vunpack.c.l.b16 %v74
    %v304 = vunpack.c.l.b16 %v75
    %v305 = vunpack.c.l.b16 %v76
    %v306 = vunpack.c.l.b16 %v77
    %v307 = vunpack.c.l.b16 %v78
    %v308 = vunpack.c.l.b16 %v79
    %v309 = vunpack.c.l.b16 %v80
    %v310 = vunpack.c.l.b16 %v81
    %v311 = vunpack.c.l.b16 %v82
    %v312 = vunpack.c.l.b16 %v83
    %v313 = vunpack.c.l.b16 %v84
    %v314 = vunpack.c.l.b16 %v85
    %v315 = vunpack.c.l.b16 %v86
    %v316 = vunpack.c.l.b16 %v87
    %v317 = vunpack.c.l.b16 %v88
    %v318 = vunpack.c.l.b16 %v89
    %v319 = vunpack.c.l.b16 %v90
    %v320 = vunpack.c.l.b16 %v91
    %v321 = vunpack.c.l.b16 %v92
    %v322 = vunpack.c.l.b16 %v93
    %v323 = vunpack.c.l.b16 %v94
    %v324 = vunpack.c.l.b16 %v95
    %v325 = vunpack.c.l.b16 %v96
    %v326 = vunpack.c.l.b16 %v97
    %v327 = vunpack.c.l.b16 %v98
    %v328 = vunpack.c.l.b16 %v99
    %v329 = vunpack.c.l.b16 %v100
    %v330 = vunpack.c.l.b16 %v101
    %v331 = vunpack.c.l.b16 %v102
    %v332 = vunpack.c.l.b16 %v103
    %v333 = vunpack.c.l.b16 %v104
    %v334 = vunpack.c.l.b16 %v105
    %v335 = vunpack.c.l.b16 %v106
    %v336 = vunpack.c.l.b16 %v107
    %v337 = vunpack.c.l.b16 %v108
    %v338 = vunpack.c.l.b16 %v109
    %v339 = vunpack.c.l.b16 %v110
    %v340 = vunpack.c.l.b16 %v111
    %v341 = vunpack.c.l.b16 %v112
    %v342 = vunpack.c.l.b16 %v113
    %v343 = vunpack.c.l.b16 %v114
    %v344 = vunpack.c.l.b16 %v115
    %v345 = vunpack.c.l.b16 %v116
    %v346 = vunpack.c.l.b16 %v117
    %v347 = vunpack.c.l.b16 %v118
    %v348 = vunpack.c.l.b16 %v119
    %v349 = vunpack.c.l.b16 %v120
    %v350 = vunpack.c.l.b16 %v121
    %v351 = vunpack.c.l.b16 %v122
    %v352 = vunpack.c.l.b16 %v123
    %v353 = vunpack.c.l.b16 %v124
    %v354 = vunpack.c.l.b16 %v125
    %v355 = vunpack.c.l.b16 %v126
    %v356 = vunpack.c.l.b16 %v127
    %v357 = vunpack.c.l.b16 %v128
    %v358 = vunpack.c.l.b16 %v129
    %v359 = vunpack.c.l.b16 %v130
    %v360 = vunpack.c.l.b16 %v131
    %v361 = vunpack.c.l.b16 %v132
    %v362 = vunpack.c.l.b16 %v133
    %v363 = vunpack.c.l.b16 %v134
    %v364 = vunpack.c.l.b16 %v135
    %v365 = vunpack.c.l.b16 %v136
    %v366 = vunpack.c.l.b16 %v137
    %v367 = vunpack.c.l.b16 %v138
    %v368 = vunpack.c.l.b16 %v139
    %v369 = vunpack.c.l.b16 %v140
    %v370 = vunpack.c.l.b16 %v141
    %v371 = vunpack.c.l.b16 %v142
    %v372 = vunpack.c.l.b16 %v143
    %v373 = vunpack.c.l.b16 %v144
    %v374 = vunpack.c.l.b16 %v145
    %v375 = vunpack.c.l.b16 %v146
    %v376 = vunpack.c.l.b16 %v147
    %v377 = vunpack.c.l.b16 %v148
    %v378 = vunpack.c.l.b16 %v149
    %v379 = vunpack.c.l.b16 %v150
    %v380 = vunpack.c.l.b16 %v151
    %v381 = vunpack.c.l.b16 %v152
    %v382 = vunpack.c.l.b16 %v153
    %v383 = vunpack.c.l.b16 %v154
    %v384 = vunpack.c.l.b16 %v155
    %v385 = vunpack.c.l.b16 %v156
    %v386 = vunpack.c.l.b16 %v157
    %v387 = vunpack.c.l.b16 %v158
    %v388 = vunpack.c.l.b16 %v159
    %v389 = vunpack.c.l.b16 %v160
    %v390 = vpack.c.b16 %v295, %v294
    %v391 = vpack.c.b16 %v297, %v296
    %v392 = vpack.c.b16 %v299, %v298
    %v393 = vpack.c.b16 %v301, %v300
    %v394 = vpack.c.b16 %v303, %v302
    %v395 = vpack.c.b16 %v305, %v304
    %v396 = vpack.c.b16 %v307, %v306
    %v397 = vpack.c.b16 %v309, %v308
    %v398 = vpack.c.b16 %v311, %v310
    %v399 = vpack.c.b16 %v313, %v312
    %v400 = vpack.c.b16 %v315, %v314
    %v401 = vpack.c.b16 %v317, %v316
    %v402 = vpack.c.b16 %v319, %v318
    %v403 = vpack.c.b16 %v321, %v320
    %v404 = vpack.c.b16 %v323, %v322
    %v405 = vpack.c.b16 %v325, %v324
    %v406 = vpack.c.b16 %v327, %v326
    %v407 = vpack.c.b16 %v329, %v328
    %v408 = vpack.c.b16 %v331, %v330
    %v409 = vpack.c.b16 %v333, %v332
    %v410 = vpack.c.b16 %v335, %v334
    %v411 = vpack.c.b16 %v337, %v336
    %v412 = vpack.c.b16 %v339, %v338
    %v413 = vpack.c.b16 %v341, %v340
    %v414 = vpack.c.b16 %v343, %v342
    %v415 = vpack.c.b16 %v345, %v344
    %v416 = vpack.c.b16 %v347, %v346
    %v417 = vpack.c.b16 %v349, %v348
    %v418 = vpack.c.b16 %v351, %v350
    %v419 = vpack.c.b16 %v353, %v352
    %v420 = vpack.c.b16 %v355, %v354
    %v421 = vpack.c.b16 %v357, %v356
    %v422 = vpack.c.b16 %v359, %v358
    %v423 = vpack.c.b16 %v361, %v360
    %v424 = vpack.c.b16 %v363, %v362
    %v425 = vpack.c.b16 %v365, %v364
    %v426 = vpack.c.b16 %v367, %v366
    %v427 = vpack.c.b16 %v369, %v368
    %v428 = vpack.c.b16 %v371, %v370
    %v429 = vpack.c.b16 %v373, %v372
    %v430 = vpack.c.b16 %v375, %v374
    %v431 = vpack.c.b16 %v377, %v376
    %v432 = vpack.c.b16 %v379, %v378
    %v433 = vpack.c.b16 %v381, %v380
    %v434 = vpack.c.b16 %v383, %v382
    %v435 = vpack.c.b16 %v385, %v384
    %v436 = vpack.c.b16 %v387, %v386
    %v437 = vpack.c.b16 %v389, %v388
    %486 = vmatprep.subr.bf16.mxu0 0
    %487 = vmatpush1.bf16.msra.mxu0 %v390
    %488 = vmatprep.subr.bf16.mxu0 0
    %489 = vmatpush1.bf16.msra.mxu0 %v391
    %490 = vmatprep.subr.bf16.mxu0 0
    %491 = vmatpush1.bf16.msra.mxu0 %v392
    %492 = vmatprep.subr.bf16.mxu0 0
    %493 = vmatpush1.bf16.msra.mxu0 %v393
    %494 = vmatprep.subr.bf16.mxu0 0
    %495 = vmatpush1.bf16.msra.mxu0 %v394
    %496 = vmatprep.subr.bf16.mxu0 0
    %497 = vmatpush1.bf16.msra.mxu0 %v395
    %498 = vmatprep.subr.bf16.mxu0 0
    %499 = vmatpush1.bf16.msra.mxu0 %v396
    %500 = vmatprep.subr.bf16.mxu0 0
    %501 = vmatpush1.bf16.msra.mxu0 %v397
    %502 = vmatprep.subr.bf16.mxu0 0
    %503 = vmatpush1.bf16.msra.mxu0 %v398
    %504 = vmatprep.subr.bf16.mxu0 0
    %505 = vmatpush1.bf16.msra.mxu0 %v399
    %506 = vmatprep.subr.bf16.mxu0 0
    %507 = vmatpush1.bf16.msra.mxu0 %v400
    %508 = vmatprep.subr.bf16.mxu0 0
    %509 = vmatpush1.bf16.msra.mxu0 %v401
    %510 = vmatprep.subr.bf16.mxu0 0
    %511 = vmatpush1.bf16.msra.mxu0 %v402
    %512 = vmatprep.subr.bf16.mxu0 0
    %513 = vmatpush1.bf16.msra.mxu0 %v403
    %514 = vmatprep.subr.bf16.mxu0 0
    %515 = vmatpush1.bf16.msra.mxu0 %v404
    %516 = vmatprep.subr.bf16.mxu0 0
    %517 = vmatpush1.bf16.msra.mxu0 %v405
    %518 = vmatprep.mubr.bf16.mxu0 %v187
    %519 = vmatmul.mubr.bf16.gmra.mrb[0].mxu0 %v186
    %v520 = vpop.f32.mrb[0].mxu0
    %v521 = vadd.f32 %v166, %v520
    %v522 = vpop.f32.mrb[0].mxu0
    %v523 = vpop.f32.mrb[0].mxu0
    %v524 = vadd.f32 %v166, %v523
    %v525 = vpop.f32.mrb[0].mxu0
    %526 = vdwg.mxu0
    %527 = vmatprep.subr.bf16.mxu0 0
    %528 = vmatpush1.bf16.msra.mxu0 %v406
    %529 = vmatprep.subr.bf16.mxu0 0
    %530 = vmatpush1.bf16.msra.mxu0 %v407
    %531 = vmatprep.subr.bf16.mxu0 0
    %532 = vmatpush1.bf16.msra.mxu0 %v408
    %533 = vmatprep.subr.bf16.mxu0 0
    %534 = vmatpush1.bf16.msra.mxu0 %v409
    %535 = vmatprep.subr.bf16.mxu0 0
    %536 = vmatpush1.bf16.msra.mxu0 %v410
    %537 = vmatprep.subr.bf16.mxu0 0
    %538 = vmatpush1.bf16.msra.mxu0 %v411
    %539 = vmatprep.subr.bf16.mxu0 0
    %540 = vmatpush1.bf16.msra.mxu0 %v412
    %541 = vmatprep.subr.bf16.mxu0 0
    %542 = vmatpush1.bf16.msra.mxu0 %v413
    %543 = vmatprep.subr.bf16.mxu0 0
    %544 = vmatpush1.bf16.msra.mxu0 %v414
    %545 = vmatprep.subr.bf16.mxu0 0
    %546 = vmatpush1.bf16.msra.mxu0 %v415
    %547 = vmatprep.subr.bf16.mxu0 0
    %548 = vmatpush1.bf16.msra.mxu0 %v416
    %549 = vmatprep.subr.bf16.mxu0 0
    %550 = vmatpush1.bf16.msra.mxu0 %v417
    %551 = vmatprep.subr.bf16.mxu0 0
    %552 = vmatpush1.bf16.msra.mxu0 %v418
    %553 = vmatprep.subr.bf16.mxu0 0
    %554 = vmatpush1.bf16.msra.mxu0 %v419
    %555 = vmatprep.subr.bf16.mxu0 0
    %556 = vmatpush1.bf16.msra.mxu0 %v420
    %557 = vmatprep.subr.bf16.mxu0 0
    %558 = vmatpush1.bf16.msra.mxu0 %v421
    %559 = vmatprep.mubr.bf16.mxu0 %v189
    %560 = vmatmul.mubr.bf16.gmra.mrb[0].mxu0 %v188
    %v561 = vpop.f32.mrb[0].mxu0
    %v562 = vadd.f32 %v521, %v561
    %v563 = vpop.f32.mrb[0].mxu0
    %v564 = vpop.f32.mrb[0].mxu0
    %v565 = vadd.f32 %v524, %v564
    %v566 = vpop.f32.mrb[0].mxu0
    %567 = vdwg.mxu0
    %568 = vmatprep.subr.bf16.mxu0 0
    %569 = vmatpush1.bf16.msra.mxu0 %v422
    %570 = vmatprep.subr.bf16.mxu0 0
    %571 = vmatpush1.bf16.msra.mxu0 %v423
    %572 = vmatprep.subr.bf16.mxu0 0
    %573 = vmatpush1.bf16.msra.mxu0 %v424
    %574 = vmatprep.subr.bf16.mxu0 0
    %575 = vmatpush1.bf16.msra.mxu0 %v425
    %576 = vmatprep.subr.bf16.mxu0 0
    %577 = vmatpush1.bf16.msra.mxu0 %v426
    %578 = vmatprep.subr.bf16.mxu0 0
    %579 = vmatpush1.bf16.msra.mxu0 %v427
    %580 = vmatprep.subr.bf16.mxu0 0
    %581 = vmatpush1.bf16.msra.mxu0 %v428
    %582 = vmatprep.subr.bf16.mxu0 0
    %583 = vmatpush1.bf16.msra.mxu0 %v429
    %584 = vmatprep.subr.bf16.mxu0 0
    %585 = vmatpush1.bf16.msra.mxu0 %v430
    %586 = vmatprep.subr.bf16.mxu0 0
    %587 = vmatpush1.bf16.msra.mxu0 %v431
    %588 = vmatprep.subr.bf16.mxu0 0
    %589 = vmatpush1.bf16.msra.mxu0 %v432
    %590 = vmatprep.subr.bf16.mxu0 0
    %591 = vmatpush1.bf16.msra.mxu0 %v433
    %592 = vmatprep.subr.bf16.mxu0 0
    %593 = vmatpush1.bf16.msra.mxu0 %v434
    %594 = vmatprep.subr.bf16.mxu0 0
    %595 = vmatpush1.bf16.msra.mxu0 %v435
    %596 = vmatprep.subr.bf16.mxu0 0
    %597 = vmatpush1.bf16.msra.mxu0 %v436
    %598 = vmatprep.subr.bf16.mxu0 0
    %599 = vmatpush1.bf16.msra.mxu0 %v437
    %600 = vmatprep.mubr.bf16.mxu0 %v191
    %601 = vmatmul.mubr.bf16.gmra.mrb[0].mxu0 %v190
    %v602 = vpop.f32.mrb[0].mxu0
    %v603 = vadd.f32 %v562, %v602
    %v604 = vpop.f32.mrb[0].mxu0
    %v605 = vpop.f32.mrb[0].mxu0
    %v606 = vadd.f32 %v565, %v605
    %v607 = vpop.f32.mrb[0].mxu0
    %608 = vdwg.mxu0
    %vm609 = vcmp.ge.f32.partialorder %v603, 0.0
    %vm610 = vcmp.ge.f32.partialorder %v606, 0.0
    %v611 = vmul.f32 %v603, 0.01
    %v612 = vmul.f32 %v606, 0.01
    %v613 = vsel %vm609, %v603, %v611
    %v614 = vsel %vm610, %v606, %v612
    %vm615 = vcmask 261120
    %616 = vst.msk [vmem:[#allocation2] sm:$0xff] %vm615, %v613
    %617 = vst.msk [vmem:[#allocation2 + $0x8] sm:$0xff] %vm615, %v614
    %v618 = vld [vmem:[%s1] sm:$0xff]
    %v619 = vld [vmem:[%s1 + $0x8] sm:$0xff]
    %v620 = vld [vmem:[%s1 + $0x10] sm:$0xff]
    %v621 = vld [vmem:[%s1 + $0x18] sm:$0xff]
    %v622 = vld [vmem:[%s1 + $0x20] sm:$0xff]
    %v623 = vld [vmem:[%s1 + $0x28] sm:$0xff]
    %v624 = vld [vmem:[%s6] sm:$0xf]
    %v625 = vld [vmem:[%s6 + $0x4] sm:$0xf]
    %v626 = vld [vmem:[%s6 + $0x8] sm:$0xf]
    %v627 = vld [vmem:[%s6 + $0xc] sm:$0xf]
    %v628 = vld [vmem:[%s6 + $0x10] sm:$0xf]
    %v629 = vld [vmem:[%s6 + $0x14] sm:$0xf]
    %v630 = vld [vmem:[%s6 + $0x18] sm:$0xf]
    %v631 = vld [vmem:[%s6 + $0x1c] sm:$0xf]
    %v632 = vld [vmem:[%s6 + $0x20] sm:$0xf]
    %v633 = vld [vmem:[%s6 + $0x24] sm:$0xf]
    %v634 = vld [vmem:[%s6 + $0x28] sm:$0xf]
    %v635 = vld [vmem:[%s6 + $0x2c] sm:$0xf]
    %v636 = vld [vmem:[%s6 + $0x30] sm:$0xf]
    %v637 = vld [vmem:[%s6 + $0x34] sm:$0xf]
    %v638 = vld [vmem:[%s6 + $0x38] sm:$0xf]
    %v639 = vld [vmem:[%s6 + $0x3c] sm:$0xf]
    %v640 = vld [vmem:[%s6 + $0x40] sm:$0xf]
    %v641 = vld [vmem:[%s6 + $0x44] sm:$0xf]
    %v642 = vld [vmem:[%s6 + $0x48] sm:$0xf]
    %v643 = vld [vmem:[%s6 + $0x4c] sm:$0xf]
    %v644 = vld [vmem:[%s6 + $0x50] sm:$0xf]
    %v645 = vld [vmem:[%s6 + $0x54] sm:$0xf]
    %v646 = vld [vmem:[%s6 + $0x58] sm:$0xf]
    %v647 = vld [vmem:[%s6 + $0x5c] sm:$0xf]
    %v648 = vld [vmem:[%s6 + $0x60] sm:$0xf]
    %v649 = vld [vmem:[%s6 + $0x64] sm:$0xf]
    %v650 = vld [vmem:[%s6 + $0x68] sm:$0xf]
    %v651 = vld [vmem:[%s6 + $0x6c] sm:$0xf]
    %v652 = vld [vmem:[%s6 + $0x70] sm:$0xf]
    %v653 = vld [vmem:[%s6 + $0x74] sm:$0xf]
    %v654 = vld [vmem:[%s6 + $0x78] sm:$0xf]
    %v655 = vld [vmem:[%s6 + $0x7c] sm:$0xf]
    %v656 = vld [vmem:[%s6 + $0x80] sm:$0xf]
    %v657 = vld [vmem:[%s6 + $0x84] sm:$0xf]
    %v658 = vld [vmem:[%s6 + $0x88] sm:$0xf]
    %v659 = vld [vmem:[%s6 + $0x8c] sm:$0xf]
    %v660 = vld [vmem:[%s6 + $0x90] sm:$0xf]
    %v661 = vld [vmem:[%s6 + $0x94] sm:$0xf]
    %v662 = vld [vmem:[%s6 + $0x98] sm:$0xf]
    %v663 = vld [vmem:[%s6 + $0x9c] sm:$0xf]
    %v664 = vld [vmem:[%s6 + $0xa0] sm:$0xf]
    %v665 = vld [vmem:[%s6 + $0xa4] sm:$0xf]
    %v666 = vld [vmem:[%s6 + $0xa8] sm:$0xf]
    %v667 = vld [vmem:[%s6 + $0xac] sm:$0xf]
    %v668 = vld [vmem:[%s6 + $0xb0] sm:$0xf]
    %v669 = vld [vmem:[%s6 + $0xb4] sm:$0xf]
    %v670 = vld [vmem:[%s6 + $0xb8] sm:$0xf]
    %v671 = vld [vmem:[%s6 + $0xbc] sm:$0xf]
    %v672 = vld [vmem:[%s6 + $0xc0] sm:$0xf]
    %v673 = vld [vmem:[%s6 + $0xc4] sm:$0xf]
    %v674 = vld [vmem:[%s6 + $0xc8] sm:$0xf]
    %v675 = vld [vmem:[%s6 + $0xcc] sm:$0xf]
    %v676 = vld [vmem:[%s6 + $0xd0] sm:$0xf]
    %v677 = vld [vmem:[%s6 + $0xd4] sm:$0xf]
    %v678 = vld [vmem:[%s6 + $0xd8] sm:$0xf]
    %v679 = vld [vmem:[%s6 + $0xdc] sm:$0xf]
    %v680 = vld [vmem:[%s6 + $0xe0] sm:$0xf]
    %v681 = vld [vmem:[%s6 + $0xe4] sm:$0xf]
    %v682 = vld [vmem:[%s6 + $0xe8] sm:$0xf]
    %v683 = vld [vmem:[%s6 + $0xec] sm:$0xf]
    %v684 = vld [vmem:[%s6 + $0xf0] sm:$0xf]
    %v685 = vld [vmem:[%s6 + $0xf4] sm:$0xf]
    %v686 = vld [vmem:[%s6 + $0xf8] sm:$0xf]
    %v687 = vld [vmem:[%s6 + $0xfc] sm:$0xf]
    %v688 = vld [vmem:[%s6 + $0x100] sm:$0xf]
    %v689 = vld [vmem:[%s6 + $0x104] sm:$0xf]
    %v690 = vld [vmem:[%s6 + $0x108] sm:$0xf]
    %v691 = vld [vmem:[%s6 + $0x10c] sm:$0xf]
    %v692 = vld [vmem:[%s6 + $0x110] sm:$0xf]
    %v693 = vld [vmem:[%s6 + $0x114] sm:$0xf]
    %v694 = vld [vmem:[%s6 + $0x118] sm:$0xf]
    %v695 = vld [vmem:[%s6 + $0x11c] sm:$0xf]
    %v696 = vld [vmem:[%s6 + $0x120] sm:$0xf]
    %v697 = vld [vmem:[%s6 + $0x124] sm:$0xf]
    %v698 = vld [vmem:[%s6 + $0x128] sm:$0xf]
    %v699 = vld [vmem:[%s6 + $0x12c] sm:$0xf]
    %v700 = vld [vmem:[%s6 + $0x130] sm:$0xf]
    %v701 = vld [vmem:[%s6 + $0x134] sm:$0xf]
    %v702 = vld [vmem:[%s6 + $0x138] sm:$0xf]
    %v703 = vld [vmem:[%s6 + $0x13c] sm:$0xf]
    %v704 = vld [vmem:[%s6 + $0x140] sm:$0xf]
    %v705 = vld [vmem:[%s6 + $0x144] sm:$0xf]
    %v706 = vld [vmem:[%s6 + $0x148] sm:$0xf]
    %v707 = vld [vmem:[%s6 + $0x14c] sm:$0xf]
    %v708 = vld [vmem:[%s6 + $0x150] sm:$0xf]
    %v709 = vld [vmem:[%s6 + $0x154] sm:$0xf]
    %v710 = vld [vmem:[%s6 + $0x158] sm:$0xf]
    %v711 = vld [vmem:[%s6 + $0x15c] sm:$0xf]
    %v712 = vld [vmem:[%s6 + $0x160] sm:$0xf]
    %v713 = vld [vmem:[%s6 + $0x164] sm:$0xf]
    %v714 = vld [vmem:[%s6 + $0x168] sm:$0xf]
    %v715 = vld [vmem:[%s6 + $0x16c] sm:$0xf]
    %v716 = vld [vmem:[%s6 + $0x170] sm:$0xf]
    %v717 = vld [vmem:[%s6 + $0x174] sm:$0xf]
    %v718 = vld [vmem:[%s6 + $0x178] sm:$0xf]
    %v719 = vld [vmem:[%s6 + $0x17c] sm:$0xf]
    %v720 = vld [vmem:[%s11] sm:$0x1]
    %v722 = vlaneseq
    %v723 = vshrl.u32 %v722, 7
    %v724 = vsub.s32 0, %v723
    %v725 = vrot.slane %v720, %v724
    %v733 = vunpack.c.l.b16 %v618
    %v734 = vunpack.c.h.b16 %v618
    %v735 = vunpack.c.l.b16 %v619
    %v736 = vunpack.c.h.b16 %v619
    %v737 = vunpack.c.l.b16 %v620
    %v738 = vunpack.c.h.b16 %v620
    %v739 = vunpack.c.l.b16 %v621
    %v740 = vunpack.c.h.b16 %v621
    %v741 = vunpack.c.l.b16 %v622
    %v742 = vunpack.c.h.b16 %v622
    %v743 = vunpack.c.l.b16 %v623
    %v744 = vunpack.c.h.b16 %v623
    %v745 = vpack.c.b16 %v739, %v733
    %v746 = vpack.c.b16 %v740, %v734
    %v747 = vpack.c.b16 %v741, %v735
    %v748 = vpack.c.b16 %v742, %v736
    %v749 = vpack.c.b16 %v743, %v737
    %v750 = vpack.c.b16 %v744, %v738
    %v853 = vunpack.c.l.b16 %v624
    %v854 = vunpack.c.l.b16 %v625
    %v855 = vunpack.c.l.b16 %v626
    %v856 = vunpack.c.l.b16 %v627
    %v857 = vunpack.c.l.b16 %v628
    %v858 = vunpack.c.l.b16 %v629
    %v859 = vunpack.c.l.b16 %v630
    %v860 = vunpack.c.l.b16 %v631
    %v861 = vunpack.c.l.b16 %v632
    %v862 = vunpack.c.l.b16 %v633
    %v863 = vunpack.c.l.b16 %v634
    %v864 = vunpack.c.l.b16 %v635
    %v865 = vunpack.c.l.b16 %v636
    %v866 = vunpack.c.l.b16 %v637
    %v867 = vunpack.c.l.b16 %v638
    %v868 = vunpack.c.l.b16 %v639
    %v869 = vunpack.c.l.b16 %v640
    %v870 = vunpack.c.l.b16 %v641
    %v871 = vunpack.c.l.b16 %v642
    %v872 = vunpack.c.l.b16 %v643
    %v873 = vunpack.c.l.b16 %v644
    %v874 = vunpack.c.l.b16 %v645
    %v875 = vunpack.c.l.b16 %v646
    %v876 = vunpack.c.l.b16 %v647
    %v877 = vunpack.c.l.b16 %v648
    %v878 = vunpack.c.l.b16 %v649
    %v879 = vunpack.c.l.b16 %v650
    %v880 = vunpack.c.l.b16 %v651
    %v881 = vunpack.c.l.b16 %v652
    %v882 = vunpack.c.l.b16 %v653
    %v883 = vunpack.c.l.b16 %v654
    %v884 = vunpack.c.l.b16 %v655
    %v885 = vunpack.c.l.b16 %v656
    %v886 = vunpack.c.l.b16 %v657
    %v887 = vunpack.c.l.b16 %v658
    %v888 = vunpack.c.l.b16 %v659
    %v889 = vunpack.c.l.b16 %v660
    %v890 = vunpack.c.l.b16 %v661
    %v891 = vunpack.c.l.b16 %v662
    %v892 = vunpack.c.l.b16 %v663
    %v893 = vunpack.c.l.b16 %v664
    %v894 = vunpack.c.l.b16 %v665
    %v895 = vunpack.c.l.b16 %v666
    %v896 = vunpack.c.l.b16 %v667
    %v897 = vunpack.c.l.b16 %v668
    %v898 = vunpack.c.l.b16 %v669
    %v899 = vunpack.c.l.b16 %v670
    %v900 = vunpack.c.l.b16 %v671
    %v901 = vunpack.c.l.b16 %v672
    %v902 = vunpack.c.l.b16 %v673
    %v903 = vunpack.c.l.b16 %v674
    %v904 = vunpack.c.l.b16 %v675
    %v905 = vunpack.c.l.b16 %v676
    %v906 = vunpack.c.l.b16 %v677
    %v907 = vunpack.c.l.b16 %v678
    %v908 = vunpack.c.l.b16 %v679
    %v909 = vunpack.c.l.b16 %v680
    %v910 = vunpack.c.l.b16 %v681
    %v911 = vunpack.c.l.b16 %v682
    %v912 = vunpack.c.l.b16 %v683
    %v913 = vunpack.c.l.b16 %v684
    %v914 = vunpack.c.l.b16 %v685
    %v915 = vunpack.c.l.b16 %v686
    %v916 = vunpack.c.l.b16 %v687
    %v917 = vunpack.c.l.b16 %v688
    %v918 = vunpack.c.l.b16 %v689
    %v919 = vunpack.c.l.b16 %v690
    %v920 = vunpack.c.l.b16 %v691
    %v921 = vunpack.c.l.b16 %v692
    %v922 = vunpack.c.l.b16 %v693
    %v923 = vunpack.c.l.b16 %v694
    %v924 = vunpack.c.l.b16 %v695
    %v925 = vunpack.c.l.b16 %v696
    %v926 = vunpack.c.l.b16 %v697
    %v927 = vunpack.c.l.b16 %v698
    %v928 = vunpack.c.l.b16 %v699
    %v929 = vunpack.c.l.b16 %v700
    %v930 = vunpack.c.l.b16 %v701
    %v931 = vunpack.c.l.b16 %v702
    %v932 = vunpack.c.l.b16 %v703
    %v933 = vunpack.c.l.b16 %v704
    %v934 = vunpack.c.l.b16 %v705
    %v935 = vunpack.c.l.b16 %v706
    %v936 = vunpack.c.l.b16 %v707
    %v937 = vunpack.c.l.b16 %v708
    %v938 = vunpack.c.l.b16 %v709
    %v939 = vunpack.c.l.b16 %v710
    %v940 = vunpack.c.l.b16 %v711
    %v941 = vunpack.c.l.b16 %v712
    %v942 = vunpack.c.l.b16 %v713
    %v943 = vunpack.c.l.b16 %v714
    %v944 = vunpack.c.l.b16 %v715
    %v945 = vunpack.c.l.b16 %v716
    %v946 = vunpack.c.l.b16 %v717
    %v947 = vunpack.c.l.b16 %v718
    %v948 = vunpack.c.l.b16 %v719
    %v949 = vpack.c.b16 %v854, %v853
    %v950 = vpack.c.b16 %v856, %v855
    %v951 = vpack.c.b16 %v858, %v857
    %v952 = vpack.c.b16 %v860, %v859
    %v953 = vpack.c.b16 %v862, %v861
    %v954 = vpack.c.b16 %v864, %v863
    %v955 = vpack.c.b16 %v866, %v865
    %v956 = vpack.c.b16 %v868, %v867
    %v957 = vpack.c.b16 %v870, %v869
    %v958 = vpack.c.b16 %v872, %v871
    %v959 = vpack.c.b16 %v874, %v873
    %v960 = vpack.c.b16 %v876, %v875
    %v961 = vpack.c.b16 %v878, %v877
    %v962 = vpack.c.b16 %v880, %v879
    %v963 = vpack.c.b16 %v882, %v881
    %v964 = vpack.c.b16 %v884, %v883
    %v965 = vpack.c.b16 %v886, %v885
    %v966 = vpack.c.b16 %v888, %v887
    %v967 = vpack.c.b16 %v890, %v889
    %v968 = vpack.c.b16 %v892, %v891
    %v969 = vpack.c.b16 %v894, %v893
    %v970 = vpack.c.b16 %v896, %v895
    %v971 = vpack.c.b16 %v898, %v897
    %v972 = vpack.c.b16 %v900, %v899
    %v973 = vpack.c.b16 %v902, %v901
    %v974 = vpack.c.b16 %v904, %v903
    %v975 = vpack.c.b16 %v906, %v905
    %v976 = vpack.c.b16 %v908, %v907
    %v977 = vpack.c.b16 %v910, %v909
    %v978 = vpack.c.b16 %v912, %v911
    %v979 = vpack.c.b16 %v914, %v913
    %v980 = vpack.c.b16 %v916, %v915
    %v981 = vpack.c.b16 %v918, %v917
    %v982 = vpack.c.b16 %v920, %v919
    %v983 = vpack.c.b16 %v922, %v921
    %v984 = vpack.c.b16 %v924, %v923
    %v985 = vpack.c.b16 %v926, %v925
    %v986 = vpack.c.b16 %v928, %v927
    %v987 = vpack.c.b16 %v930, %v929
    %v988 = vpack.c.b16 %v932, %v931
    %v989 = vpack.c.b16 %v934, %v933
    %v990 = vpack.c.b16 %v936, %v935
    %v991 = vpack.c.b16 %v938, %v937
    %v992 = vpack.c.b16 %v940, %v939
    %v993 = vpack.c.b16 %v942, %v941
    %v994 = vpack.c.b16 %v944, %v943
    %v995 = vpack.c.b16 %v946, %v945
    %v996 = vpack.c.b16 %v948, %v947
    %1045 = vmatprep.subr.bf16.mxu0 0
    %1046 = vmatpush1.bf16.msra.mxu0 %v949
    %1047 = vmatprep.subr.bf16.mxu0 0
    %1048 = vmatpush1.bf16.msra.mxu0 %v950
    %1049 = vmatprep.subr.bf16.mxu0 0
    %1050 = vmatpush1.bf16.msra.mxu0 %v951
    %1051 = vmatprep.subr.bf16.mxu0 0
    %1052 = vmatpush1.bf16.msra.mxu0 %v952
    %1053 = vmatprep.subr.bf16.mxu0 0
    %1054 = vmatpush1.bf16.msra.mxu0 %v953
    %1055 = vmatprep.subr.bf16.mxu0 0
    %1056 = vmatpush1.bf16.msra.mxu0 %v954
    %1057 = vmatprep.subr.bf16.mxu0 0
    %1058 = vmatpush1.bf16.msra.mxu0 %v955
    %1059 = vmatprep.subr.bf16.mxu0 0
    %1060 = vmatpush1.bf16.msra.mxu0 %v956
    %1061 = vmatprep.subr.bf16.mxu0 0
    %1062 = vmatpush1.bf16.msra.mxu0 %v957
    %1063 = vmatprep.subr.bf16.mxu0 0
    %1064 = vmatpush1.bf16.msra.mxu0 %v958
    %1065 = vmatprep.subr.bf16.mxu0 0
    %1066 = vmatpush1.bf16.msra.mxu0 %v959
    %1067 = vmatprep.subr.bf16.mxu0 0
    %1068 = vmatpush1.bf16.msra.mxu0 %v960
    %1069 = vmatprep.subr.bf16.mxu0 0
    %1070 = vmatpush1.bf16.msra.mxu0 %v961
    %1071 = vmatprep.subr.bf16.mxu0 0
    %1072 = vmatpush1.bf16.msra.mxu0 %v962
    %1073 = vmatprep.subr.bf16.mxu0 0
    %1074 = vmatpush1.bf16.msra.mxu0 %v963
    %1075 = vmatprep.subr.bf16.mxu0 0
    %1076 = vmatpush1.bf16.msra.mxu0 %v964
    %1077 = vmatprep.mubr.bf16.mxu0 %v746
    %1078 = vmatmul.mubr.bf16.gmra.mrb[0].mxu0 %v745
    %v1079 = vpop.f32.mrb[0].mxu0
    %v1080 = vadd.f32 %v725, %v1079
    %v1081 = vpop.f32.mrb[0].mxu0
    %v1082 = vpop.f32.mrb[0].mxu0
    %v1083 = vadd.f32 %v725, %v1082
    %v1084 = vpop.f32.mrb[0].mxu0
    %1085 = vdwg.mxu0
    %1086 = vmatprep.subr.bf16.mxu0 0
    %1087 = vmatpush1.bf16.msra.mxu0 %v965
    %1088 = vmatprep.subr.bf16.mxu0 0
    %1089 = vmatpush1.bf16.msra.mxu0 %v966
    %1090 = vmatprep.subr.bf16.mxu0 0
    %1091 = vmatpush1.bf16.msra.mxu0 %v967
    %1092 = vmatprep.subr.bf16.mxu0 0
    %1093 = vmatpush1.bf16.msra.mxu0 %v968
    %1094 = vmatprep.subr.bf16.mxu0 0
    %1095 = vmatpush1.bf16.msra.mxu0 %v969
    %1096 = vmatprep.subr.bf16.mxu0 0
    %1097 = vmatpush1.bf16.msra.mxu0 %v970
    %1098 = vmatprep.subr.bf16.mxu0 0
    %1099 = vmatpush1.bf16.msra.mxu0 %v971
    %1100 = vmatprep.subr.bf16.mxu0 0
    %1101 = vmatpush1.bf16.msra.mxu0 %v972
    %1102 = vmatprep.subr.bf16.mxu0 0
    %1103 = vmatpush1.bf16.msra.mxu0 %v973
    %1104 = vmatprep.subr.bf16.mxu0 0
    %1105 = vmatpush1.bf16.msra.mxu0 %v974
    %1106 = vmatprep.subr.bf16.mxu0 0
    %1107 = vmatpush1.bf16.msra.mxu0 %v975
    %1108 = vmatprep.subr.bf16.mxu0 0
    %1109 = vmatpush1.bf16.msra.mxu0 %v976
    %1110 = vmatprep.subr.bf16.mxu0 0
    %1111 = vmatpush1.bf16.msra.mxu0 %v977
    %1112 = vmatprep.subr.bf16.mxu0 0
    %1113 = vmatpush1.bf16.msra.mxu0 %v978
    %1114 = vmatprep.subr.bf16.mxu0 0
    %1115 = vmatpush1.bf16.msra.mxu0 %v979
    %1116 = vmatprep.subr.bf16.mxu0 0
    %1117 = vmatpush1.bf16.msra.mxu0 %v980
    %1118 = vmatprep.mubr.bf16.mxu0 %v748
    %1119 = vmatmul.mubr.bf16.gmra.mrb[0].mxu0 %v747
    %v1120 = vpop.f32.mrb[0].mxu0
    %v1121 = vadd.f32 %v1080, %v1120
    %v1122 = vpop.f32.mrb[0].mxu0
    %v1123 = vpop.f32.mrb[0].mxu0
    %v1124 = vadd.f32 %v1083, %v1123
    %v1125 = vpop.f32.mrb[0].mxu0
    %1126 = vdwg.mxu0
    %1127 = vmatprep.subr.bf16.mxu0 0
    %1128 = vmatpush1.bf16.msra.mxu0 %v981
    %1129 = vmatprep.subr.bf16.mxu0 0
    %1130 = vmatpush1.bf16.msra.mxu0 %v982
    %1131 = vmatprep.subr.bf16.mxu0 0
    %1132 = vmatpush1.bf16.msra.mxu0 %v983
    %1133 = vmatprep.subr.bf16.mxu0 0
    %1134 = vmatpush1.bf16.msra.mxu0 %v984
    %1135 = vmatprep.subr.bf16.mxu0 0
    %1136 = vmatpush1.bf16.msra.mxu0 %v985
    %1137 = vmatprep.subr.bf16.mxu0 0
    %1138 = vmatpush1.bf16.msra.mxu0 %v986
    %1139 = vmatprep.subr.bf16.mxu0 0
    %1140 = vmatpush1.bf16.msra.mxu0 %v987
    %1141 = vmatprep.subr.bf16.mxu0 0
    %1142 = vmatpush1.bf16.msra.mxu0 %v988
    %1143 = vmatprep.subr.bf16.mxu0 0
    %1144 = vmatpush1.bf16.msra.mxu0 %v989
    %1145 = vmatprep.subr.bf16.mxu0 0
    %1146 = vmatpush1.bf16.msra.mxu0 %v990
    %1147 = vmatprep.subr.bf16.mxu0 0
    %1148 = vmatpush1.bf16.msra.mxu0 %v991
    %1149 = vmatprep.subr.bf16.mxu0 0
    %1150 = vmatpush1.bf16.msra.mxu0 %v992
    %1151 = vmatprep.subr.bf16.mxu0 0
    %1152 = vmatpush1.bf16.msra.mxu0 %v993
    %1153 = vmatprep.subr.bf16.mxu0 0
    %1154 = vmatpush1.bf16.msra.mxu0 %v994
    %1155 = vmatprep.subr.bf16.mxu0 0
    %1156 = vmatpush1.bf16.msra.mxu0 %v995
    %1157 = vmatprep.subr.bf16.mxu0 0
    %1158 = vmatpush1.bf16.msra.mxu0 %v996
    %1159 = vmatprep.mubr.bf16.mxu0 %v750
    %1160 = vmatmul.mubr.bf16.gmra.mrb[0].mxu0 %v749
    %v1161 = vpop.f32.mrb[0].mxu0
    %v1162 = vadd.f32 %v1121, %v1161
    %v1163 = vpop.f32.mrb[0].mxu0
    %v1164 = vpop.f32.mrb[0].mxu0
    %v1165 = vadd.f32 %v1124, %v1164
    %v1166 = vpop.f32.mrb[0].mxu0
    %1167 = vdwg.mxu0
    %vm1168 = vcmp.ge.f32.partialorder %v1162, 0.0
    %vm1169 = vcmp.ge.f32.partialorder %v1165, 0.0
    %v1170 = vmul.f32 %v1162, 0.01
    %v1171 = vmul.f32 %v1165, 0.01
    %v1172 = vsel %vm1168, %v1162, %v1170
    %v1173 = vsel %vm1169, %v1165, %v1171
    %1174 = vst.msk [vmem:[#allocation4] sm:$0xff] %vm615, %v1172
    %1175 = vst.msk [vmem:[#allocation4 + $0x8] sm:$0xff] %vm615, %v1173
    %v1176 = vld [vmem:[%s2] sm:$0xff]
    %v1177 = vld [vmem:[%s2 + $0x8] sm:$0xff]
    %v1178 = vld [vmem:[%s7] sm:$0x1f]
    %v1179 = vld [vmem:[%s12] sm:$0x1]
    %v1181 = vlaneseq
    %v1182 = vshrl.u32 %v1181, 7
    %v1183 = vsub.s32 0, %v1182
    %v1184 = vrot.slane %v1179, %v1183
    %vm1186 = vcmask 39936
    %v1188 = vsel %vm1186, %v1176, 0
    %v1191 = vsel %vm1186, %v1177, 0
    %vm1193 = vcmask 1044480
    %v1195 = vsel %vm1193, %v1178, 0
    %1197 = vmatprep.subr.mxu0 0.0
    %1198 = vmatpush1.msra.mxu0 %v1195
    %1199 = vmatprep.subr.mxu0 0.0
    %1200 = vmatpush1.msra.mxu0 0.0
    %1201 = vmatprep.subr.mxu0 0.0
    %1202 = vmatpush1.msra.mxu0 0.0
    %1203 = vmatprep.subr.mxu0 0.0
    %1204 = vmatpush1.msra.mxu0 0.0
    %1205 = vmatprep.subr.mxu0 0.0
    %1206 = vmatpush1.msra.mxu0 0.0
    %1207 = vmatprep.subr.mxu0 0.0
    %1208 = vmatpush1.msra.mxu0 0.0
    %1209 = vmatprep.subr.mxu0 0.0
    %1210 = vmatpush1.msra.mxu0 0.0
    %1211 = vmatprep.subr.mxu0 0.0
    %1212 = vmatpush1.msra.mxu0 0.0
    %1213 = vmatprep.subr.mxu0 0.0
    %1214 = vmatpush1.msra.mxu0 0.0
    %1215 = vmatprep.subr.mxu0 0.0
    %1216 = vmatpush1.msra.mxu0 0.0
    %1217 = vmatprep.subr.mxu0 0.0
    %1218 = vmatpush1.msra.mxu0 0.0
    %1219 = vmatprep.subr.mxu0 0.0
    %1220 = vmatpush1.msra.mxu0 0.0
    %1221 = vmatprep.subr.mxu0 0.0
    %1222 = vmatpush1.msra.mxu0 0.0
    %1223 = vmatprep.subr.mxu0 0.0
    %1224 = vmatpush1.msra.mxu0 0.0
    %1225 = vmatprep.subr.mxu0 0.0
    %1226 = vmatpush1.msra.mxu0 0.0
    %1227 = vmatprep.subr.mxu0 0.0
    %1228 = vmatpush1.msra.mxu0 0.0
    %1229 = vmatprep.subr.mxu0 0.0
    %1230 = vmatpush1.msra.mxu0 0.0
    %1231 = vmatprep.subr.mxu0 0.0
    %1232 = vmatpush1.msra.mxu0 0.0
    %1233 = vmatprep.subr.mxu0 0.0
    %1234 = vmatpush1.msra.mxu0 0.0
    %1235 = vmatprep.subr.mxu0 0.0
    %1236 = vmatpush1.msra.mxu0 0.0
    %1237 = vmatprep.subr.mxu0 0.0
    %1238 = vmatpush1.msra.mxu0 0.0
    %1239 = vmatprep.subr.mxu0 0.0
    %1240 = vmatpush1.msra.mxu0 0.0
    %1241 = vmatprep.subr.mxu0 0.0
    %1242 = vmatpush1.msra.mxu0 0.0
    %1243 = vmatprep.subr.mxu0 0.0
    %1244 = vmatpush1.msra.mxu0 0.0
    %1245 = vmatprep.subr.mxu0 0.0
    %1246 = vmatpush1.msra.mxu0 0.0
    %1247 = vmatprep.subr.mxu0 0.0
    %1248 = vmatpush1.msra.mxu0 0.0
    %1249 = vmatprep.subr.mxu0 0.0
    %1250 = vmatpush1.msra.mxu0 0.0
    %1251 = vmatprep.subr.mxu0 0.0
    %1252 = vmatpush1.msra.mxu0 0.0
    %1253 = vmatprep.subr.mxu0 0.0
    %1254 = vmatpush1.msra.mxu0 0.0
    %1255 = vmatprep.subr.mxu0 0.0
    %1256 = vmatpush1.msra.mxu0 0.0
    %1257 = vmatprep.subr.mxu0 0.0
    %1258 = vmatpush1.msra.mxu0 0.0
    %1259 = vmatprep.subr.mxu0 0.0
    %1260 = vmatpush1.msra.mxu0 0.0
    %1261 = vmatprep.mubr.f32.mxu0 0.0
    %1262 = vmatmul.mubr.f32.gmra.mrb[0].mxu0 %v1188
    %v1263 = vpop.f32.mrb[0].mxu0
    %v1264 = vadd.f32 %v1184, %v1263
    %v1265 = vpop.f32.mrb[0].mxu0
    %1266 = vmatprep.mubr.f32.mxu0 0.0
    %1267 = vmatmul.mubr.f32.gmra.mrb[0].mxu0 %v1191
    %v1268 = vpop.f32.mrb[0].mxu0
    %v1269 = vadd.f32 %v1184, %v1268
    %v1270 = vpop.f32.mrb[0].mxu0
    %1271 = vdwg.mxu0
    %vm1272 = vcmp.ge.f32.partialorder %v1264, 0.0
    %vm1273 = vcmp.ge.f32.partialorder %v1269, 0.0
    %v1274 = vmul.f32 %v1264, 0.01
    %v1275 = vmul.f32 %v1269, 0.01
    %v1276 = vsel %vm1272, %v1264, %v1274
    %v1277 = vsel %vm1273, %v1269, %v1275
    %1278 = vst.msk [vmem:[#allocation6] sm:$0xff] %vm615, %v1276
    %1279 = vst.msk [vmem:[#allocation6 + $0x8] sm:$0xff] %vm615, %v1277
    %v1280 = vld [vmem:[%s3] sm:$0xff]
    %v1281 = vld [vmem:[%s3 + $0x8] sm:$0xff]
    %v1282 = vld [vmem:[%s8] sm:$0x7]
    %v1283 = vld [vmem:[%s13] sm:$0x1]
    %v1285 = vlaneseq
    %v1286 = vshrl.u32 %v1285, 7
    %v1287 = vsub.s32 0, %v1286
    %v1288 = vrot.slane %v1283, %v1287
    %vm1290 = vcmask 23552
    %v1292 = vsel %vm1290, %v1280, 0
    %v1295 = vsel %vm1290, %v1281, 0
    %vm1297 = vcmask 1042432
    %v1299 = vsel %vm1297, %v1282, 0
    %1301 = vmatprep.subr.mxu0 0.0
    %1302 = vmatpush1.msra.mxu0 %v1299
    %1303 = vmatprep.subr.mxu0 0.0
    %1304 = vmatpush1.msra.mxu0 0.0
    %1305 = vmatprep.subr.mxu0 0.0
    %1306 = vmatpush1.msra.mxu0 0.0
    %1307 = vmatprep.subr.mxu0 0.0
    %1308 = vmatpush1.msra.mxu0 0.0
    %1309 = vmatprep.subr.mxu0 0.0
    %1310 = vmatpush1.msra.mxu0 0.0
    %1311 = vmatprep.subr.mxu0 0.0
    %1312 = vmatpush1.msra.mxu0 0.0
    %1313 = vmatprep.subr.mxu0 0.0
    %1314 = vmatpush1.msra.mxu0 0.0
    %1315 = vmatprep.subr.mxu0 0.0
    %1316 = vmatpush1.msra.mxu0 0.0
    %1317 = vmatprep.subr.mxu0 0.0
    %1318 = vmatpush1.msra.mxu0 0.0
    %1319 = vmatprep.subr.mxu0 0.0
    %1320 = vmatpush1.msra.mxu0 0.0
    %1321 = vmatprep.subr.mxu0 0.0
    %1322 = vmatpush1.msra.mxu0 0.0
    %1323 = vmatprep.subr.mxu0 0.0
    %1324 = vmatpush1.msra.mxu0 0.0
    %1325 = vmatprep.subr.mxu0 0.0
    %1326 = vmatpush1.msra.mxu0 0.0
    %1327 = vmatprep.subr.mxu0 0.0
    %1328 = vmatpush1.msra.mxu0 0.0
    %1329 = vmatprep.subr.mxu0 0.0
    %1330 = vmatpush1.msra.mxu0 0.0
    %1331 = vmatprep.subr.mxu0 0.0
    %1332 = vmatpush1.msra.mxu0 0.0
    %1333 = vmatprep.subr.mxu0 0.0
    %1334 = vmatpush1.msra.mxu0 0.0
    %1335 = vmatprep.subr.mxu0 0.0
    %1336 = vmatpush1.msra.mxu0 0.0
    %1337 = vmatprep.subr.mxu0 0.0
    %1338 = vmatpush1.msra.mxu0 0.0
    %1339 = vmatprep.subr.mxu0 0.0
    %1340 = vmatpush1.msra.mxu0 0.0
    %1341 = vmatprep.subr.mxu0 0.0
    %1342 = vmatpush1.msra.mxu0 0.0
    %1343 = vmatprep.subr.mxu0 0.0
    %1344 = vmatpush1.msra.mxu0 0.0
    %1345 = vmatprep.subr.mxu0 0.0
    %1346 = vmatpush1.msra.mxu0 0.0
    %1347 = vmatprep.subr.mxu0 0.0
    %1348 = vmatpush1.msra.mxu0 0.0
    %1349 = vmatprep.subr.mxu0 0.0
    %1350 = vmatpush1.msra.mxu0 0.0
    %1351 = vmatprep.subr.mxu0 0.0
    %1352 = vmatpush1.msra.mxu0 0.0
    %1353 = vmatprep.subr.mxu0 0.0
    %1354 = vmatpush1.msra.mxu0 0.0
    %1355 = vmatprep.subr.mxu0 0.0
    %1356 = vmatpush1.msra.mxu0 0.0
    %1357 = vmatprep.subr.mxu0 0.0
    %1358 = vmatpush1.msra.mxu0 0.0
    %1359 = vmatprep.subr.mxu0 0.0
    %1360 = vmatpush1.msra.mxu0 0.0
    %1361 = vmatprep.subr.mxu0 0.0
    %1362 = vmatpush1.msra.mxu0 0.0
    %1363 = vmatprep.subr.mxu0 0.0
    %1364 = vmatpush1.msra.mxu0 0.0
    %1365 = vmatprep.mubr.f32.mxu0 0.0
    %1366 = vmatmul.mubr.f32.gmra.mrb[0].mxu0 %v1292
    %v1367 = vpop.f32.mrb[0].mxu0
    %v1368 = vadd.f32 %v1288, %v1367
    %v1369 = vpop.f32.mrb[0].mxu0
    %1370 = vmatprep.mubr.f32.mxu0 0.0
    %1371 = vmatmul.mubr.f32.gmra.mrb[0].mxu0 %v1295
    %v1372 = vpop.f32.mrb[0].mxu0
    %v1373 = vadd.f32 %v1288, %v1372
    %v1374 = vpop.f32.mrb[0].mxu0
    %1375 = vdwg.mxu0
    %vm1376 = vcmp.ge.f32.partialorder %v1368, 0.0
    %vm1377 = vcmp.ge.f32.partialorder %v1373, 0.0
    %v1378 = vmul.f32 %v1368, 0.01
    %v1379 = vmul.f32 %v1373, 0.01
    %v1380 = vsel %vm1376, %v1368, %v1378
    %v1381 = vsel %vm1377, %v1373, %v1379
    %1382 = vst.msk [vmem:[#allocation7] sm:$0xff] %vm615, %v1380
    %1383 = vst.msk [vmem:[#allocation7 + $0x8] sm:$0xff] %vm615, %v1381
    %v1384 = vld [vmem:[%s4] sm:$0xff]
    %v1385 = vld [vmem:[%s4 + $0x8] sm:$0xff]
    %v1386 = vld [vmem:[%s9] sm:$0xff]
    %v1387 = vld [vmem:[%s9 + $0x8] sm:$0x1]
    %v1388 = vld [vmem:[%s14] sm:$0x1]
    %v1390 = vlaneseq
    %v1391 = vshrl.u32 %v1390, 7
    %v1392 = vsub.s32 0, %v1391
    %v1393 = vrot.slane %v1388, %v1392
    %vm1395 = vcmask 72704
    %v1397 = vsel %vm1395, %v1384, 0
    %v1400 = vsel %vm1395, %v1385, 0
    %vm1402 = vcmask 1040384
    %v1404 = vsel %vm1402, %v1387, 0
    %1406 = vmatprep.subr.mxu0 0.0
    %1407 = vmatpush1.msra.mxu0 %v1386
    %1408 = vmatprep.subr.mxu0 0.0
    %1409 = vmatpush1.msra.mxu0 %v1404
    %1410 = vmatprep.subr.mxu0 0.0
    %1411 = vmatpush1.msra.mxu0 0.0
    %1412 = vmatprep.subr.mxu0 0.0
    %1413 = vmatpush1.msra.mxu0 0.0
    %1414 = vmatprep.subr.mxu0 0.0
    %1415 = vmatpush1.msra.mxu0 0.0
    %1416 = vmatprep.subr.mxu0 0.0
    %1417 = vmatpush1.msra.mxu0 0.0
    %1418 = vmatprep.subr.mxu0 0.0
    %1419 = vmatpush1.msra.mxu0 0.0
    %1420 = vmatprep.subr.mxu0 0.0
    %1421 = vmatpush1.msra.mxu0 0.0
    %1422 = vmatprep.subr.mxu0 0.0
    %1423 = vmatpush1.msra.mxu0 0.0
    %1424 = vmatprep.subr.mxu0 0.0
    %1425 = vmatpush1.msra.mxu0 0.0
    %1426 = vmatprep.subr.mxu0 0.0
    %1427 = vmatpush1.msra.mxu0 0.0
    %1428 = vmatprep.subr.mxu0 0.0
    %1429 = vmatpush1.msra.mxu0 0.0
    %1430 = vmatprep.subr.mxu0 0.0
    %1431 = vmatpush1.msra.mxu0 0.0
    %1432 = vmatprep.subr.mxu0 0.0
    %1433 = vmatpush1.msra.mxu0 0.0
    %1434 = vmatprep.subr.mxu0 0.0
    %1435 = vmatpush1.msra.mxu0 0.0
    %1436 = vmatprep.subr.mxu0 0.0
    %1437 = vmatpush1.msra.mxu0 0.0
    %1438 = vmatprep.subr.mxu0 0.0
    %1439 = vmatpush1.msra.mxu0 0.0
    %1440 = vmatprep.subr.mxu0 0.0
    %1441 = vmatpush1.msra.mxu0 0.0
    %1442 = vmatprep.subr.mxu0 0.0
    %1443 = vmatpush1.msra.mxu0 0.0
    %1444 = vmatprep.subr.mxu0 0.0
    %1445 = vmatpush1.msra.mxu0 0.0
    %1446 = vmatprep.subr.mxu0 0.0
    %1447 = vmatpush1.msra.mxu0 0.0
    %1448 = vmatprep.subr.mxu0 0.0
    %1449 = vmatpush1.msra.mxu0 0.0
    %1450 = vmatprep.subr.mxu0 0.0
    %1451 = vmatpush1.msra.mxu0 0.0
    %1452 = vmatprep.subr.mxu0 0.0
    %1453 = vmatpush1.msra.mxu0 0.0
    %1454 = vmatprep.subr.mxu0 0.0
    %1455 = vmatpush1.msra.mxu0 0.0
    %1456 = vmatprep.subr.mxu0 0.0
    %1457 = vmatpush1.msra.mxu0 0.0
    %1458 = vmatprep.subr.mxu0 0.0
    %1459 = vmatpush1.msra.mxu0 0.0
    %1460 = vmatprep.subr.mxu0 0.0
    %1461 = vmatpush1.msra.mxu0 0.0
    %1462 = vmatprep.subr.mxu0 0.0
    %1463 = vmatpush1.msra.mxu0 0.0
    %1464 = vmatprep.subr.mxu0 0.0
    %1465 = vmatpush1.msra.mxu0 0.0
    %1466 = vmatprep.subr.mxu0 0.0
    %1467 = vmatpush1.msra.mxu0 0.0
    %1468 = vmatprep.subr.mxu0 0.0
    %1469 = vmatpush1.msra.mxu0 0.0
    %1470 = vmatprep.mubr.f32.mxu0 0.0
    %1471 = vmatmul.mubr.f32.gmra.mrb[0].mxu0 %v1397
    %v1472 = vpop.f32.mrb[0].mxu0
    %v1473 = vadd.f32 %v1393, %v1472
    %v1474 = vpop.f32.mrb[0].mxu0
    %1475 = vmatprep.mubr.f32.mxu0 0.0
    %1476 = vmatmul.mubr.f32.gmra.mrb[0].mxu0 %v1400
    %v1477 = vpop.f32.mrb[0].mxu0
    %v1478 = vadd.f32 %v1393, %v1477
    %v1479 = vpop.f32.mrb[0].mxu0
    %1480 = vdwg.mxu0
    %vm1481 = vcmp.ge.f32.partialorder %v1473, 0.0
    %vm1482 = vcmp.ge.f32.partialorder %v1478, 0.0
    %v1483 = vmul.f32 %v1473, 0.01
    %v1484 = vmul.f32 %v1478, 0.01
    %v1485 = vsel %vm1481, %v1473, %v1483
    %v1486 = vsel %vm1482, %v1478, %v1484
    %1487 = vst.msk [vmem:[#allocation9] sm:$0xff] %vm615, %v1485
    %1488 = vst.msk [vmem:[#allocation9 + $0x8] sm:$0xff] %vm615, %v1486
    // Predicated region
    $region62: #{tpu_custom_call.1} parent=1 // pred_check
      _
    $region63: #{tpu_custom_call.1} parent=1 // pred_check_branch
      %1490 = sbr.rel (0) target = $region65
    $region64: #{tpu_custom_call.1} parent=1 // pred_region
      %s1492 = ssub.s32 256, 256
      %1493 = vsyncadd [#allocation3], %s1492
      %s1494 = sshll.u32 [#allocation2], 4
      %s1495 = int_to_ptr.vmem [resolvable:$true] %s1494
      %1500 = dma.vmem_to_hbm [thread:$0]  %s1495, 256, %s15, [#allocation3], 128, 128, 8
    $region65: #{tpu_custom_call.1} parent=1 // pred_fallthru
      _
    // Predicated region
    $region66: #{tpu_custom_call.1} parent=1 // pred_check
      _
    $region67: #{tpu_custom_call.1} parent=1 // pred_check_branch
      %1502 = sbr.rel (0) target = $region69
    $region68: #{tpu_custom_call.1} parent=1 // pred_region
      %s1504 = ssub.s32 256, 256
      %1505 = vsyncadd [#allocation5], %s1504
      %s1506 = sshll.u32 [#allocation4], 4
      %s1507 = int_to_ptr.vmem [resolvable:$true] %s1506
      %1512 = dma.vmem_to_hbm [thread:$0]  %s1507, 256, %s16, [#allocation5], 128, 128, 8
    $region69: #{tpu_custom_call.1} parent=1 // pred_fallthru
      _
    // Predicated region
    $region70: #{tpu_custom_call.1} parent=1 // pred_check
      _
    $region71: #{tpu_custom_call.1} parent=1 // pred_check_branch
      %1514 = sbr.rel (0) target = $region73
    $region72: #{tpu_custom_call.1} parent=1 // pred_region
      %s1516 = ssub.s32 256, 256
      %1517 = vsyncadd [#allocation5], %s1516
      %s1518 = sshll.u32 [#allocation6], 4
      %s1519 = int_to_ptr.vmem [resolvable:$true] %s1518
      %1524 = dma.vmem_to_hbm [thread:$0]  %s1519, 256, %s17, [#allocation5], 128, 128, 8
    $region73: #{tpu_custom_call.1} parent=1 // pred_fallthru
      _
    // Predicated region
    $region74: #{tpu_custom_call.1} parent=1 // pred_check
      _
    $region75: #{tpu_custom_call.1} parent=1 // pred_check_branch
      %1526 = sbr.rel (0) target = $region77
    $region76: #{tpu_custom_call.1} parent=1 // pred_region
      %s1528 = ssub.s32 256, 256
      %1529 = vsyncadd [#allocation8], %s1528
      %s1530 = sshll.u32 [#allocation7], 4
      %s1531 = int_to_ptr.vmem [resolvable:$true] %s1530
      %1536 = dma.vmem_to_hbm [thread:$0]  %s1531, 256, %s18, [#allocation8], 128, 128, 8
    $region77: #{tpu_custom_call.1} parent=1 // pred_fallthru
      _
    // Predicated region
    $region78: #{tpu_custom_call.1} parent=1 // pred_check
      _
    $region79: #{tpu_custom_call.1} parent=1 // pred_check_branch
      %1538 = sbr.rel (0) target = $region81
    $region80: #{tpu_custom_call.1} parent=1 // pred_region
      %s1540 = ssub.s32 256, 256
      %1541 = vsyncadd [#allocation8], %s1540
      %s1542 = sshll.u32 [#allocation9], 4
      %s1543 = int_to_ptr.vmem [resolvable:$true] %s1542
      %1548 = dma.vmem_to_hbm [thread:$0]  %s1543, 256, %s19, [#allocation8], 128, 128, 8
    $region81: #{tpu_custom_call.1} parent=1 // pred_fallthru
      _
    // Predicated region
    $region82: #{tpu_custom_call.1} parent=1 // pred_check
      _
    $region83: #{tpu_custom_call.1} parent=1 // pred_check_branch
      %1550 = sbr.rel (0) target = $region85
    $region84: #{tpu_custom_call.1} parent=1 // pred_region
      %1551 = dma.done [#allocation3], 256
    $region85: #{tpu_custom_call.1} parent=1 // pred_fallthru
      _
    // Predicated region
    $region86: #{tpu_custom_call.1} parent=1 // pred_check
      _
    $region87: #{tpu_custom_call.1} parent=1 // pred_check_branch
      %1553 = sbr.rel (0) target = $region89
    $region88: #{tpu_custom_call.1} parent=1 // pred_region
      %1554 = dma.done [#allocation5], 256
    $region89: #{tpu_custom_call.1} parent=1 // pred_fallthru
      _
    // Predicated region
    $region90: #{tpu_custom_call.1} parent=1 // pred_check
      _
    $region91: #{tpu_custom_call.1} parent=1 // pred_check_branch
      %1556 = sbr.rel (0) target = $region93
    $region92: #{tpu_custom_call.1} parent=1 // pred_region
      %1557 = dma.done [#allocation5], 256
    $region93: #{tpu_custom_call.1} parent=1 // pred_fallthru
      _
    // Predicated region
    $region94: #{tpu_custom_call.1} parent=1 // pred_check
      _
    $region95: #{tpu_custom_call.1} parent=1 // pred_check_branch
      %1559 = sbr.rel (0) target = $region97
    $region96: #{tpu_custom_call.1} parent=1 // pred_region
      %1560 = dma.done [#allocation8], 256
    $region97: #{tpu_custom_call.1} parent=1 // pred_fallthru
      _
    // Predicated region
    $region98: #{tpu_custom_call.1} parent=1 // pred_check
      _
    $region99: #{tpu_custom_call.1} parent=1 // pred_check_branch
      %1562 = sbr.rel (0) target = $region101
    $region100: #{tpu_custom_call.1} parent=1 // pred_region
      %1563 = dma.done [#allocation8], 256
    $region101: #{tpu_custom_call.1} parent=1 // pred_fallthru
      _
    %1564 = vsyncpa [#allocation3], 1
    %1565 = vsyncpa [#allocation5], 1
    %1566 = vsyncpa [#allocation8], 1

</llo_original>
